<compile_context>
chip_gen: v6e
topology: v6e:2x2x1
jax: 0.10.0
libtpu: 0.0.40
codegen_flags: <defaults>
</compile_context>

<pallas_src>
import functools
import math

import jax
import jax.numpy as jnp
from jax.experimental import pallas as pl
from jax.experimental.pallas import tpu as pltpu


# ----------------------- fused QKV projection + attention --------------------
def _fused_attention_kernel(x_ref, w_ref, b_ref, bm_ref, mask_ref,
                            cfg_ref, cdg_ref, ddg_ref,
                            o_ref,
                            qkv_ref, ctx_ref,
                            *, num_heads, head_dim, tq):
    E = num_heads * head_dim
    qt = pl.program_id(1)

    # ---- fused Q/K/V projection, computed ONCE per batch step (qt == 0) ----
    # wqkv is resident bf16; f32 MXU accumulation; bf16 scratch (consumed as
    # bf16 MXU feeds below anyway). Scale 1/sqrt(D) pre-folded into W_q / b_q.
    @pl.when(qt == 0)
    def _():
        x = x_ref[0].astype(jnp.bfloat16)                       # (S, E)
        qkv_ref[...] = (
            jnp.dot(x, w_ref[...], preferred_element_type=jnp.float32)
            + b_ref[...]
        ).astype(jnp.bfloat16)                                  # (S, 3E) bf16

    # ---- head-invariant edge-code indicator maps for this q-row tile -------
    m = bm_ref[0, 0].astype(jnp.int32)                          # (TQ, S) widen int8
    mask = mask_ref[0, 0]                                       # (1, S) f32

    def eq(code):
        return (m == code).astype(jnp.float32)

    # bias = cfg*A + cdg*B + ddg*C ; A/B/C shared by all heads.
    a_cfg = eq(2) + eq(5) + eq(9) + eq(12)
    a_cdg = eq(3) + eq(5) + eq(10) + eq(12)
    a_ddg = eq(7) + eq(9) + eq(10) + eq(12)

    row0 = pl.multiple_of(qt * tq, tq)

    # ---- per-head attention (static unroll) ---------------------------------
    for h in range(num_heads):
        lo = h * head_dim
        q = qkv_ref[pl.ds(row0, tq), lo:lo + head_dim]           # (TQ, D) bf16
        k = qkv_ref[:, E + lo:E + lo + head_dim]                 # (S,  D) bf16
        v = qkv_ref[:, 2 * E + lo:2 * E + lo + head_dim]         # (S,  D) bf16

        # scores = q @ k^T without materializing k.T (contract last dims).
        scores = jax.lax.dot_general(
            q, k, dimension_numbers=(((1,), (1,)), ((), ())),
            preferred_element_type=jnp.float32)                  # (TQ, S) f32

        scores = scores + (cfg_ref[h] * a_cfg + cdg_ref[h] * a_cdg
                           + ddg_ref[h] * a_ddg) + mask

        scores = scores - jnp.max(scores, axis=-1, keepdims=True)
        p = jnp.exp(scores)
        p = p * pl.reciprocal(jnp.sum(p, axis=-1, keepdims=True), approx=True)

        # context accumulated into VMEM scratch (full-width store afterwards).
        ctx_ref[:, lo:lo + head_dim] = jnp.dot(
            p.astype(jnp.bfloat16), v, preferred_element_type=jnp.float32)

    # Single lane-dense full-width writeback in (B, S, E) layout.
    o_ref[0] = ctx_ref[...].astype(o_ref.dtype)


# ------------------------------ wrappers --------------------------------------
def prepare_params(params, num_heads):
    """One-time weight prep (call once at init, not per forward):
    torch Linear is x @ W^T + b -> transpose once; fold 1/sqrt(D) into the Q
    columns; fuse Q/K/V into a single (E, 3E) bf16 operand; flatten the
    per-head edge coefficients for SMEM scalar access."""
    E = params["wq"].shape[0]
    D = E // num_heads
    scale = 1.0 / math.sqrt(D)
    wqkv = jnp.concatenate(
        [params["wq"].T * scale, params["wk"].T, params["wv"].T], axis=1)
    bqkv = jnp.concatenate([params["bq"] * scale, params["bk"], params["bv"]])
    return {
        "wqkv": wqkv.astype(jnp.bfloat16),
        "bqkv": bqkv.reshape(1, -1).astype(jnp.float32),
        "cfg_edge": params["cfg_edge"].reshape(-1).astype(jnp.float32),
        "cdg_edge": params["cdg_edge"].reshape(-1).astype(jnp.float32),
        "ddg_edge": params["ddg_edge"].reshape(-1).astype(jnp.float32),
    }


def bert_self_attention(hidden_states, attention_mask, attention_bias_matrix,
                        prepared, num_heads, *, tile_q=256):
    B, S, E = hidden_states.shape
    D = E // num_heads
    tq = tile_q if S % tile_q == 0 else S                        # q-row tile
    nq = S // tq

    kernel = functools.partial(_fused_attention_kernel,
                               num_heads=num_heads, head_dim=D, tq=tq)
    return pl.pallas_call(
        kernel,
        out_shape=jax.ShapeDtypeStruct((B, S, E), hidden_states.dtype),
        grid=(B, nq),
        in_specs=[
            pl.BlockSpec((1, S, E), lambda b, q: (b, 0, 0)),      # hidden block
            pl.BlockSpec((E, 3 * E), lambda b, q: (0, 0)),        # resident wqkv (bf16)
            pl.BlockSpec((1, 3 * E), lambda b, q: (0, 0)),        # resident bqkv
            pl.BlockSpec((1, 1, tq, S), lambda b, q: (b, 0, q, 0)),  # edge codes (int8)
            pl.BlockSpec((1, 1, 1, S), lambda b, q: (b, 0, 0, 0)),   # additive mask
            pl.BlockSpec(memory_space=pltpu.MemorySpace.SMEM),    # cfg_edge (H,)
            pl.BlockSpec(memory_space=pltpu.MemorySpace.SMEM),    # cdg_edge (H,)
            pl.BlockSpec(memory_space=pltpu.MemorySpace.SMEM),    # ddg_edge (H,)
        ],
        out_specs=pl.BlockSpec((1, tq, E), lambda b, q: (b, q, 0)),
        scratch_shapes=[
            pltpu.VMEM((S, 3 * E), jnp.bfloat16),                 # fused Q|K|V
            pltpu.VMEM((tq, E), jnp.float32),                     # context tile
        ],
        compiler_params=pltpu.CompilerParams(
            dimension_semantics=("parallel", "arbitrary"),
            vmem_limit_bytes=64 * 1024 * 1024,
        ),
    )(hidden_states, prepared["wqkv"], prepared["bqkv"],
      attention_bias_matrix, attention_mask,
      prepared["cfg_edge"], prepared["cdg_edge"], prepared["ddg_edge"])


# ----------------------------- pure-JAX reference -----------------------------
def reference(hidden_states, attention_mask, bm, params, num_heads):
    B, S, E = hidden_states.shape
    D = E // num_heads
    q = hidden_states @ params["wq"].T + params["bq"]
    k = hidden_states @ params["wk"].T + params["bk"]
    v = hidden_states @ params["wv"].T + params["bv"]
    sh = lambda t: t.reshape(B, S, num_heads, D).transpose(0, 2, 1, 3)
    qh, kh, vh = sh(q), sh(k), sh(v)
    scores = jnp.einsum("bhqd,bhkd->bhqk", qh, kh) / math.sqrt(D)
    cfg = params["cfg_edge"].reshape(1, num_heads, 1, 1)
    cdg = params["cdg_edge"].reshape(1, num_heads, 1, 1)
    ddg = params["ddg_edge"].reshape(1, num_heads, 1, 1)
    f = lambda val: (bm == val).astype(jnp.float32)
    bias = (f(2) * cfg + f(3) * cdg + f(7) * ddg + f(5) * (cdg + cfg)
            + f(9) * (cfg + ddg) + f(10) * (ddg + cdg)
            + f(12) * (cdg + cfg + ddg))
    scores = scores + bias + attention_mask
    probs = jax.nn.softmax(scores, axis=-1)
    ctx = jnp.einsum("bhqk,bhkd->bhqd", probs, vh)
    return ctx.transpose(0, 2, 1, 3).reshape(B, S, E)


if __name__ == "__main__":
    B, S, H, D = 2, 8, 4, 8
    E = H * D  # hidden_size = 32

    key = jax.random.PRNGKey(0)
    keys = jax.random.split(key, 12)

    params = {
        "wq": 0.02 * jax.random.normal(keys[0], (E, E), jnp.float32),
        "bq": 0.02 * jax.random.normal(keys[1], (E,), jnp.float32),
        "wk": 0.02 * jax.random.normal(keys[2], (E, E), jnp.float32),
        "bk": 0.02 * jax.random.normal(keys[3], (E,), jnp.float32),
        "wv": 0.02 * jax.random.normal(keys[4], (E, E), jnp.float32),
        "bv": 0.02 * jax.random.normal(keys[5], (E,), jnp.float32),
        # torch shape (H, 1)
        "cfg_edge": 0.1 * jax.random.normal(keys[6], (H, 1), jnp.float32),
        "cdg_edge": 0.1 * jax.random.normal(keys[7], (H, 1), jnp.float32),
        "ddg_edge": 0.1 * jax.random.normal(keys[8], (H, 1), jnp.float32),
    }

    hidden_states = jax.random.normal(keys[9], (B, S, E), jnp.float32)
    attention_mask = jnp.where(
        jax.random.uniform(keys[10], (B, 1, 1, S)) < 0.9, 0.0, -10000.0
    ).astype(jnp.float32)
    # Edge codes fit in int8 -> 4x less HBM traffic for the (S, S) block.
    attention_bias_matrix = jax.random.randint(
        keys[11], (B, 1, S, S), 0, 13, dtype=jnp.int32).astype(jnp.int8)

    prepared = prepare_params(params, H)  # one-time init-side weight prep

    out = bert_self_attention(hidden_states, attention_mask,
                              attention_bias_matrix, prepared, H)
    out = jax.block_until_ready(out)

    ref = reference(hidden_states, attention_mask, attention_bias_matrix,
                    params, H)
    assert out.shape == (B, S, E)
    assert jnp.allclose(out, ref, atol=3e-3, rtol=2e-2), "mismatch vs reference"

    print("KERNEL_OK")
</pallas_src>

<mosaic_0001>
module attributes {stable_mosaic.version = 11 : i64} {
  func.func @_fused_attention_kernel(%arg0: i32, %arg1: i32, %arg2: memref<1x8x32xf32, #tpu.memory_space<vmem>>, %arg3: memref<32x96xbf16, #tpu.memory_space<vmem>>, %arg4: memref<1x96xf32, #tpu.memory_space<vmem>>, %arg5: memref<1x1x8x8xi8, #tpu.memory_space<vmem>>, %arg6: memref<1x1x1x8xf32, #tpu.memory_space<vmem>>, %arg7: memref<4xf32, #tpu.memory_space<smem>>, %arg8: memref<4xf32, #tpu.memory_space<smem>>, %arg9: memref<4xf32, #tpu.memory_space<smem>>, %arg10: memref<1x8x32xf32, #tpu.memory_space<vmem>>, %arg11: memref<8x96xbf16, #tpu.memory_space<vmem>>, %arg12: memref<8x32xf32, #tpu.memory_space<vmem>>) attributes {dimension_semantics = [#tpu.dimension_semantics<parallel>, #tpu.dimension_semantics<arbitrary>], iteration_bounds = array<i64: 2, 1>, scalar_prefetch = 0 : i64, scratch_operands = 2 : i64, tpu.core_type = #tpu.core_type<tc>, window_params = [{transform_indices = @transform_0, window_bounds = array<i64: 1, 8, 32>}, {pipeline_mode = #tpu.pipeline_mode<synchronous>, transform_indices = @transform_1, window_bounds = array<i64: 32, 96>}, {pipeline_mode = #tpu.pipeline_mode<synchronous>, transform_indices = @transform_2, window_bounds = array<i64: 1, 96>}, {transform_indices = @transform_3, window_bounds = array<i64: 1, 1, 8, 8>}, {transform_indices = @transform_4, window_bounds = array<i64: 1, 1, 1, 8>}, {transform_indices = @transform_5, window_bounds = array<i64: 4>}, {transform_indices = @transform_6, window_bounds = array<i64: 4>}, {transform_indices = @transform_7, window_bounds = array<i64: 4>}, {transform_indices = @transform_8, window_bounds = array<i64: 1, 8, 32>}]} {
    %c0_i32 = arith.constant 0 : i32
    %0 = arith.cmpi eq, %arg1, %c0_i32 : i32
    %1 = arith.extui %0 : i1 to i32
    %c0_i32_0 = arith.constant 0 : i32
    %2 = arith.cmpi ne, %1, %c0_i32_0 : i32
    scf.if %2 {
      %c0_59 = arith.constant 0 : index
      %c0_60 = arith.constant 0 : index
      %c0_61 = arith.constant 0 : index
      %199 = vector.load %arg2[%c0_59, %c0_60, %c0_61] : memref<1x8x32xf32, #tpu.memory_space<vmem>>, vector<1x8x32xf32>
      %200 = vector.shape_cast %199 : vector<1x8x32xf32> to vector<8x32xf32>
      %201 = arith.truncf %200 : vector<8x32xf32> to vector<8x32xbf16>
      %c0_62 = arith.constant 0 : index
      %c0_63 = arith.constant 0 : index
      %202 = vector.load %arg3[%c0_62, %c0_63] : memref<32x96xbf16, #tpu.memory_space<vmem>>, vector<32x96xbf16>
      %cst_64 = arith.constant dense<0.000000e+00> : vector<8x96xf32>
      %203 = tpu.matmul %201, %202, %cst_64 {dimension_numbers = #tpu.dot_dimension_numbers<[1], [0], [0], [1], [0, 0, 1, 1], [], []>} : vector<8x32xbf16>, vector<32x96xbf16>, vector<8x96xf32> -> vector<8x96xf32>
      %c0_65 = arith.constant 0 : index
      %c0_66 = arith.constant 0 : index
      %204 = vector.load %arg4[%c0_65, %c0_66] : memref<1x96xf32, #tpu.memory_space<vmem>>, vector<1x96xf32>
      %205 = vector.broadcast %204 : vector<1x96xf32> to vector<8x96xf32>
      %206 = arith.addf %203, %205 : vector<8x96xf32>
      %207 = arith.truncf %206 : vector<8x96xf32> to vector<8x96xbf16>
      %c0_67 = arith.constant 0 : index
      %c0_68 = arith.constant 0 : index
      %208 = vector.load %arg11[%c0_67, %c0_68] : memref<8x96xbf16, #tpu.memory_space<vmem>>, vector<8x96xbf16>
      tpu.vector_store %arg11[%c0_67, %c0_68], %207 {strides = array<i32>} : memref<8x96xbf16, #tpu.memory_space<vmem>>, vector<8x96xbf16>,
    } else {
    }
    %c0 = arith.constant 0 : index
    %c0_1 = arith.constant 0 : index
    %c0_2 = arith.constant 0 : index
    %c0_3 = arith.constant 0 : index
    %3 = vector.load %arg5[%c0, %c0_1, %c0_2, %c0_3] : memref<1x1x8x8xi8, #tpu.memory_space<vmem>>, vector<1x1x8x8xi8>
    %4 = vector.shape_cast %3 : vector<1x1x8x8xi8> to vector<8x8xi8>
    %5 = arith.extsi %4 : vector<8x8xi8> to vector<8x8xi32>
    %c0_4 = arith.constant 0 : index
    %c0_5 = arith.constant 0 : index
    %c0_6 = arith.constant 0 : index
    %c0_7 = arith.constant 0 : index
    %6 = vector.load %arg6[%c0_4, %c0_5, %c0_6, %c0_7] : memref<1x1x1x8xf32, #tpu.memory_space<vmem>>, vector<1x1x1x8xf32>
    %7 = vector.shape_cast %6 : vector<1x1x1x8xf32> to vector<1x8xf32>
    %c2_i32 = arith.constant 2 : i32
    %8 = vector.broadcast %c2_i32 : i32 to vector<8x8xi32>
    %9 = arith.cmpi eq, %5, %8 : vector<8x8xi32>
    %10 = arith.extui %9 : vector<8x8xi1> to vector<8x8xi32>
    %11 = arith.sitofp %10 : vector<8x8xi32> to vector<8x8xf32>
    %c5_i32 = arith.constant 5 : i32
    %12 = vector.broadcast %c5_i32 : i32 to vector<8x8xi32>
    %13 = arith.cmpi eq, %5, %12 : vector<8x8xi32>
    %14 = arith.extui %13 : vector<8x8xi1> to vector<8x8xi32>
    %15 = arith.sitofp %14 : vector<8x8xi32> to vector<8x8xf32>
    %16 = arith.addf %11, %15 : vector<8x8xf32>
    %c9_i32 = arith.constant 9 : i32
    %17 = vector.broadcast %c9_i32 : i32 to vector<8x8xi32>
    %18 = arith.cmpi eq, %5, %17 : vector<8x8xi32>
    %19 = arith.extui %18 : vector<8x8xi1> to vector<8x8xi32>
    %20 = arith.sitofp %19 : vector<8x8xi32> to vector<8x8xf32>
    %21 = arith.addf %16, %20 : vector<8x8xf32>
    %c12_i32 = arith.constant 12 : i32
    %22 = vector.broadcast %c12_i32 : i32 to vector<8x8xi32>
    %23 = arith.cmpi eq, %5, %22 : vector<8x8xi32>
    %24 = arith.extui %23 : vector<8x8xi1> to vector<8x8xi32>
    %25 = arith.sitofp %24 : vector<8x8xi32> to vector<8x8xf32>
    %26 = arith.addf %21, %25 : vector<8x8xf32>
    %c3_i32 = arith.constant 3 : i32
    %27 = vector.broadcast %c3_i32 : i32 to vector<8x8xi32>
    %28 = arith.cmpi eq, %5, %27 : vector<8x8xi32>
    %29 = arith.extui %28 : vector<8x8xi1> to vector<8x8xi32>
    %30 = arith.sitofp %29 : vector<8x8xi32> to vector<8x8xf32>
    %c5_i32_8 = arith.constant 5 : i32
    %31 = vector.broadcast %c5_i32_8 : i32 to vector<8x8xi32>
    %32 = arith.cmpi eq, %5, %31 : vector<8x8xi32>
    %33 = arith.extui %32 : vector<8x8xi1> to vector<8x8xi32>
    %34 = arith.sitofp %33 : vector<8x8xi32> to vector<8x8xf32>
    %35 = arith.addf %30, %34 : vector<8x8xf32>
    %c10_i32 = arith.constant 10 : i32
    %36 = vector.broadcast %c10_i32 : i32 to vector<8x8xi32>
    %37 = arith.cmpi eq, %5, %36 : vector<8x8xi32>
    %38 = arith.extui %37 : vector<8x8xi1> to vector<8x8xi32>
    %39 = arith.sitofp %38 : vector<8x8xi32> to vector<8x8xf32>
    %40 = arith.addf %35, %39 : vector<8x8xf32>
    %c12_i32_9 = arith.constant 12 : i32
    %41 = vector.broadcast %c12_i32_9 : i32 to vector<8x8xi32>
    %42 = arith.cmpi eq, %5, %41 : vector<8x8xi32>
    %43 = arith.extui %42 : vector<8x8xi1> to vector<8x8xi32>
    %44 = arith.sitofp %43 : vector<8x8xi32> to vector<8x8xf32>
    %45 = arith.addf %40, %44 : vector<8x8xf32>
    %c7_i32 = arith.constant 7 : i32
    %46 = vector.broadcast %c7_i32 : i32 to vector<8x8xi32>
    %47 = arith.cmpi eq, %5, %46 : vector<8x8xi32>
    %48 = arith.extui %47 : vector<8x8xi1> to vector<8x8xi32>
    %49 = arith.sitofp %48 : vector<8x8xi32> to vector<8x8xf32>
    %c9_i32_10 = arith.constant 9 : i32
    %50 = vector.broadcast %c9_i32_10 : i32 to vector<8x8xi32>
    %51 = arith.cmpi eq, %5, %50 : vector<8x8xi32>
    %52 = arith.extui %51 : vector<8x8xi1> to vector<8x8xi32>
    %53 = arith.sitofp %52 : vector<8x8xi32> to vector<8x8xf32>
    %54 = arith.addf %49, %53 : vector<8x8xf32>
    %c10_i32_11 = arith.constant 10 : i32
    %55 = vector.broadcast %c10_i32_11 : i32 to vector<8x8xi32>
    %56 = arith.cmpi eq, %5, %55 : vector<8x8xi32>
    %57 = arith.extui %56 : vector<8x8xi1> to vector<8x8xi32>
    %58 = arith.sitofp %57 : vector<8x8xi32> to vector<8x8xf32>
    %59 = arith.addf %54, %58 : vector<8x8xf32>
    %c12_i32_12 = arith.constant 12 : i32
    %60 = vector.broadcast %c12_i32_12 : i32 to vector<8x8xi32>
    %61 = arith.cmpi eq, %5, %60 : vector<8x8xi32>
    %62 = arith.extui %61 : vector<8x8xi1> to vector<8x8xi32>
    %63 = arith.sitofp %62 : vector<8x8xi32> to vector<8x8xf32>
    %64 = arith.addf %59, %63 : vector<8x8xf32>
    %c8_i32 = arith.constant 8 : i32
    %65 = arith.muli %arg1, %c8_i32 : i32
    %66 = tpu.assume_multiple %65, 8 : i32
    %67 = arith.index_cast %66 : i32 to index
    %c0_13 = arith.constant 0 : index
    %68 = vector.load %arg11[%67, %c0_13] : memref<8x96xbf16, #tpu.memory_space<vmem>>, vector<8x8xbf16>
    %c0_14 = arith.constant 0 : index
    %c32 = arith.constant 32 : index
    %69 = vector.load %arg11[%c0_14, %c32] : memref<8x96xbf16, #tpu.memory_space<vmem>>, vector<8x8xbf16>
    %c0_15 = arith.constant 0 : index
    %c64 = arith.constant 64 : index
    %70 = vector.load %arg11[%c0_15, %c64] : memref<8x96xbf16, #tpu.memory_space<vmem>>, vector<8x8xbf16>
    %cst = arith.constant dense<0.000000e+00> : vector<8x8xf32>
    %71 = tpu.matmul %68, %69, %cst {dimension_numbers = #tpu.dot_dimension_numbers<[1], [1], [0], [0], [0, 0, 1, 0], [], []>} : vector<8x8xbf16>, vector<8x8xbf16>, vector<8x8xf32> -> vector<8x8xf32>
    %c0_16 = arith.constant 0 : index
    %72 = memref.load %arg7[%c0_16] : memref<4xf32, #tpu.memory_space<smem>>
    %73 = vector.broadcast %72 : f32 to vector<8x8xf32>
    %74 = arith.mulf %73, %26 : vector<8x8xf32>
    %c0_17 = arith.constant 0 : index
    %75 = memref.load %arg8[%c0_17] : memref<4xf32, #tpu.memory_space<smem>>
    %76 = vector.broadcast %75 : f32 to vector<8x8xf32>
    %77 = arith.mulf %76, %45 : vector<8x8xf32>
    %78 = arith.addf %74, %77 : vector<8x8xf32>
    %c0_18 = arith.constant 0 : index
    %79 = memref.load %arg9[%c0_18] : memref<4xf32, #tpu.memory_space<smem>>
    %80 = vector.broadcast %79 : f32 to vector<8x8xf32>
    %81 = arith.mulf %80, %64 : vector<8x8xf32>
    %82 = arith.addf %78, %81 : vector<8x8xf32>
    %83 = arith.addf %71, %82 : vector<8x8xf32>
    %84 = vector.broadcast %7 : vector<1x8xf32> to vector<8x8xf32>
    %85 = arith.addf %83, %84 : vector<8x8xf32>
    %cst_19 = arith.constant dense<0xFF800000> : vector<8xf32>
    %86 = vector.multi_reduction <maximumf>, %85, %cst_19 [1] : vector<8x8xf32> to vector<8xf32>
    %87 = vector.shape_cast %86 : vector<8xf32> to vector<8x1xf32>
    %88 = vector.broadcast %87 : vector<8x1xf32> to vector<8x8xf32>
    %89 = arith.subf %85, %88 : vector<8x8xf32>
    %90 = math.exp %89 : vector<8x8xf32>
    %cst_20 = arith.constant dense<0.000000e+00> : vector<8xf32>
    %91 = vector.multi_reduction <add>, %90, %cst_20 [1] : vector<8x8xf32> to vector<8xf32>
    %92 = vector.shape_cast %91 : vector<8xf32> to vector<8x1xf32>
    %93 = tpu.reciprocal %92 {approx = true} : vector<8x1xf32> -> vector<8x1xf32>
    %94 = vector.broadcast %93 : vector<8x1xf32> to vector<8x8xf32>
    %95 = arith.mulf %90, %94 : vector<8x8xf32>
    %96 = arith.truncf %95 : vector<8x8xf32> to vector<8x8xbf16>
    %cst_21 = arith.constant dense<0.000000e+00> : vector<8x8xf32>
    %97 = tpu.matmul %96, %70, %cst_21 {dimension_numbers = #tpu.dot_dimension_numbers<[1], [0], [0], [1], [0, 0, 1, 1], [], []>} : vector<8x8xbf16>, vector<8x8xbf16>, vector<8x8xf32> -> vector<8x8xf32>
    %c0_22 = arith.constant 0 : index
    %c0_23 = arith.constant 0 : index
    %98 = vector.load %arg12[%c0_22, %c0_23] : memref<8x32xf32, #tpu.memory_space<vmem>>, vector<8x8xf32>
    tpu.vector_store %arg12[%c0_22, %c0_23], %97 {strides = array<i32>} : memref<8x32xf32, #tpu.memory_space<vmem>>, vector<8x8xf32>,
    %99 = arith.index_cast %66 : i32 to index
    %c8 = arith.constant 8 : index
    %100 = vector.load %arg11[%99, %c8] : memref<8x96xbf16, #tpu.memory_space<vmem>>, vector<8x8xbf16>
    %c0_24 = arith.constant 0 : index
    %c40 = arith.constant 40 : index
    %101 = vector.load %arg11[%c0_24, %c40] : memref<8x96xbf16, #tpu.memory_space<vmem>>, vector<8x8xbf16>
    %c0_25 = arith.constant 0 : index
    %c72 = arith.constant 72 : index
    %102 = vector.load %arg11[%c0_25, %c72] : memref<8x96xbf16, #tpu.memory_space<vmem>>, vector<8x8xbf16>
    %cst_26 = arith.constant dense<0.000000e+00> : vector<8x8xf32>
    %103 = tpu.matmul %100, %101, %cst_26 {dimension_numbers = #tpu.dot_dimension_numbers<[1], [1], [0], [0], [0, 0, 1, 0], [], []>} : vector<8x8xbf16>, vector<8x8xbf16>, vector<8x8xf32> -> vector<8x8xf32>
    %c1 = arith.constant 1 : index
    %104 = memref.load %arg7[%c1] : memref<4xf32, #tpu.memory_space<smem>>
    %105 = vector.broadcast %104 : f32 to vector<8x8xf32>
    %106 = arith.mulf %105, %26 : vector<8x8xf32>
    %c1_27 = arith.constant 1 : index
    %107 = memref.load %arg8[%c1_27] : memref<4xf32, #tpu.memory_space<smem>>
    %108 = vector.broadcast %107 : f32 to vector<8x8xf32>
    %109 = arith.mulf %108, %45 : vector<8x8xf32>
    %110 = arith.addf %106, %109 : vector<8x8xf32>
    %c1_28 = arith.constant 1 : index
    %111 = memref.load %arg9[%c1_28] : memref<4xf32, #tpu.memory_space<smem>>
    %112 = vector.broadcast %111 : f32 to vector<8x8xf32>
    %113 = arith.mulf %112, %64 : vector<8x8xf32>
    %114 = arith.addf %110, %113 : vector<8x8xf32>
    %115 = arith.addf %103, %114 : vector<8x8xf32>
    %116 = vector.broadcast %7 : vector<1x8xf32> to vector<8x8xf32>
    %117 = arith.addf %115, %116 : vector<8x8xf32>
    %cst_29 = arith.constant dense<0xFF800000> : vector<8xf32>
    %118 = vector.multi_reduction <maximumf>, %117, %cst_29 [1] : vector<8x8xf32> to vector<8xf32>
    %119 = vector.shape_cast %118 : vector<8xf32> to vector<8x1xf32>
    %120 = vector.broadcast %119 : vector<8x1xf32> to vector<8x8xf32>
    %121 = arith.subf %117, %120 : vector<8x8xf32>
    %122 = math.exp %121 : vector<8x8xf32>
    %cst_30 = arith.constant dense<0.000000e+00> : vector<8xf32>
    %123 = vector.multi_reduction <add>, %122, %cst_30 [1] : vector<8x8xf32> to vector<8xf32>
    %124 = vector.shape_cast %123 : vector<8xf32> to vector<8x1xf32>
    %125 = tpu.reciprocal %124 {approx = true} : vector<8x1xf32> -> vector<8x1xf32>
    %126 = vector.broadcast %125 : vector<8x1xf32> to vector<8x8xf32>
    %127 = arith.mulf %122, %126 : vector<8x8xf32>
    %128 = arith.truncf %127 : vector<8x8xf32> to vector<8x8xbf16>
    %cst_31 = arith.constant dense<0.000000e+00> : vector<8x8xf32>
    %129 = tpu.matmul %128, %102, %cst_31 {dimension_numbers = #tpu.dot_dimension_numbers<[1], [0], [0], [1], [0, 0, 1, 1], [], []>} : vector<8x8xbf16>, vector<8x8xbf16>, vector<8x8xf32> -> vector<8x8xf32>
    %c0_32 = arith.constant 0 : index
    %c8_33 = arith.constant 8 : index
    %130 = vector.load %arg12[%c0_32, %c8_33] : memref<8x32xf32, #tpu.memory_space<vmem>>, vector<8x8xf32>
    tpu.vector_store %arg12[%c0_32, %c8_33], %129 {strides = array<i32>} : memref<8x32xf32, #tpu.memory_space<vmem>>, vector<8x8xf32>,
    %131 = arith.index_cast %66 : i32 to index
    %c16 = arith.constant 16 : index
    %132 = vector.load %arg11[%131, %c16] : memref<8x96xbf16, #tpu.memory_space<vmem>>, vector<8x8xbf16>
    %c0_34 = arith.constant 0 : index
    %c48 = arith.constant 48 : index
    %133 = vector.load %arg11[%c0_34, %c48] : memref<8x96xbf16, #tpu.memory_space<vmem>>, vector<8x8xbf16>
    %c0_35 = arith.constant 0 : index
    %c80 = arith.constant 80 : index
    %134 = vector.load %arg11[%c0_35, %c80] : memref<8x96xbf16, #tpu.memory_space<vmem>>, vector<8x8xbf16>
    %cst_36 = arith.constant dense<0.000000e+00> : vector<8x8xf32>
    %135 = tpu.matmul %132, %133, %cst_36 {dimension_numbers = #tpu.dot_dimension_numbers<[1], [1], [0], [0], [0, 0, 1, 0], [], []>} : vector<8x8xbf16>, vector<8x8xbf16>, vector<8x8xf32> -> vector<8x8xf32>
    %c2 = arith.constant 2 : index
    %136 = memref.load %arg7[%c2] : memref<4xf32, #tpu.memory_space<smem>>
    %137 = vector.broadcast %136 : f32 to vector<8x8xf32>
    %138 = arith.mulf %137, %26 : vector<8x8xf32>
    %c2_37 = arith.constant 2 : index
    %139 = memref.load %arg8[%c2_37] : memref<4xf32, #tpu.memory_space<smem>>
    %140 = vector.broadcast %139 : f32 to vector<8x8xf32>
    %141 = arith.mulf %140, %45 : vector<8x8xf32>
    %142 = arith.addf %138, %141 : vector<8x8xf32>
    %c2_38 = arith.constant 2 : index
    %143 = memref.load %arg9[%c2_38] : memref<4xf32, #tpu.memory_space<smem>>
    %144 = vector.broadcast %143 : f32 to vector<8x8xf32>
    %145 = arith.mulf %144, %64 : vector<8x8xf32>
    %146 = arith.addf %142, %145 : vector<8x8xf32>
    %147 = arith.addf %135, %146 : vector<8x8xf32>
    %148 = vector.broadcast %7 : vector<1x8xf32> to vector<8x8xf32>
    %149 = arith.addf %147, %148 : vector<8x8xf32>
    %cst_39 = arith.constant dense<0xFF800000> : vector<8xf32>
    %150 = vector.multi_reduction <maximumf>, %149, %cst_39 [1] : vector<8x8xf32> to vector<8xf32>
    %151 = vector.shape_cast %150 : vector<8xf32> to vector<8x1xf32>
    %152 = vector.broadcast %151 : vector<8x1xf32> to vector<8x8xf32>
    %153 = arith.subf %149, %152 : vector<8x8xf32>
    %154 = math.exp %153 : vector<8x8xf32>
    %cst_40 = arith.constant dense<0.000000e+00> : vector<8xf32>
    %155 = vector.multi_reduction <add>, %154, %cst_40 [1] : vector<8x8xf32> to vector<8xf32>
    %156 = vector.shape_cast %155 : vector<8xf32> to vector<8x1xf32>
    %157 = tpu.reciprocal %156 {approx = true} : vector<8x1xf32> -> vector<8x1xf32>
    %158 = vector.broadcast %157 : vector<8x1xf32> to vector<8x8xf32>
    %159 = arith.mulf %154, %158 : vector<8x8xf32>
    %160 = arith.truncf %159 : vector<8x8xf32> to vector<8x8xbf16>
    %cst_41 = arith.constant dense<0.000000e+00> : vector<8x8xf32>
    %161 = tpu.matmul %160, %134, %cst_41 {dimension_numbers = #tpu.dot_dimension_numbers<[1], [0], [0], [1], [0, 0, 1, 1], [], []>} : vector<8x8xbf16>, vector<8x8xbf16>, vector<8x8xf32> -> vector<8x8xf32>
    %c0_42 = arith.constant 0 : index
    %c16_43 = arith.constant 16 : index
    %162 = vector.load %arg12[%c0_42, %c16_43] : memref<8x32xf32, #tpu.memory_space<vmem>>, vector<8x8xf32>
    tpu.vector_store %arg12[%c0_42, %c16_43], %161 {strides = array<i32>} : memref<8x32xf32, #tpu.memory_space<vmem>>, vector<8x8xf32>,
    %163 = arith.index_cast %66 : i32 to index
    %c24 = arith.constant 24 : index
    %164 = vector.load %arg11[%163, %c24] : memref<8x96xbf16, #tpu.memory_space<vmem>>, vector<8x8xbf16>
    %c0_44 = arith.constant 0 : index
    %c56 = arith.constant 56 : index
    %165 = vector.load %arg11[%c0_44, %c56] : memref<8x96xbf16, #tpu.memory_space<vmem>>, vector<8x8xbf16>
    %c0_45 = arith.constant 0 : index
    %c88 = arith.constant 88 : index
    %166 = vector.load %arg11[%c0_45, %c88] : memref<8x96xbf16, #tpu.memory_space<vmem>>, vector<8x8xbf16>
    %cst_46 = arith.constant dense<0.000000e+00> : vector<8x8xf32>
    %167 = tpu.matmul %164, %165, %cst_46 {dimension_numbers = #tpu.dot_dimension_numbers<[1], [1], [0], [0], [0, 0, 1, 0], [], []>} : vector<8x8xbf16>, vector<8x8xbf16>, vector<8x8xf32> -> vector<8x8xf32>
    %c3 = arith.constant 3 : index
    %168 = memref.load %arg7[%c3] : memref<4xf32, #tpu.memory_space<smem>>
    %169 = vector.broadcast %168 : f32 to vector<8x8xf32>
    %170 = arith.mulf %169, %26 : vector<8x8xf32>
    %c3_47 = arith.constant 3 : index
    %171 = memref.load %arg8[%c3_47] : memref<4xf32, #tpu.memory_space<smem>>
    %172 = vector.broadcast %171 : f32 to vector<8x8xf32>
    %173 = arith.mulf %172, %45 : vector<8x8xf32>
    %174 = arith.addf %170, %173 : vector<8x8xf32>
    %c3_48 = arith.constant 3 : index
    %175 = memref.load %arg9[%c3_48] : memref<4xf32, #tpu.memory_space<smem>>
    %176 = vector.broadcast %175 : f32 to vector<8x8xf32>
    %177 = arith.mulf %176, %64 : vector<8x8xf32>
    %178 = arith.addf %174, %177 : vector<8x8xf32>
    %179 = arith.addf %167, %178 : vector<8x8xf32>
    %180 = vector.broadcast %7 : vector<1x8xf32> to vector<8x8xf32>
    %181 = arith.addf %179, %180 : vector<8x8xf32>
    %cst_49 = arith.constant dense<0xFF800000> : vector<8xf32>
    %182 = vector.multi_reduction <maximumf>, %181, %cst_49 [1] : vector<8x8xf32> to vector<8xf32>
    %183 = vector.shape_cast %182 : vector<8xf32> to vector<8x1xf32>
    %184 = vector.broadcast %183 : vector<8x1xf32> to vector<8x8xf32>
    %185 = arith.subf %181, %184 : vector<8x8xf32>
    %186 = math.exp %185 : vector<8x8xf32>
    %cst_50 = arith.constant dense<0.000000e+00> : vector<8xf32>
    %187 = vector.multi_reduction <add>, %186, %cst_50 [1] : vector<8x8xf32> to vector<8xf32>
    %188 = vector.shape_cast %187 : vector<8xf32> to vector<8x1xf32>
    %189 = tpu.reciprocal %188 {approx = true} : vector<8x1xf32> -> vector<8x1xf32>
    %190 = vector.broadcast %189 : vector<8x1xf32> to vector<8x8xf32>
    %191 = arith.mulf %186, %190 : vector<8x8xf32>
    %192 = arith.truncf %191 : vector<8x8xf32> to vector<8x8xbf16>
    %cst_51 = arith.constant dense<0.000000e+00> : vector<8x8xf32>
    %193 = tpu.matmul %192, %166, %cst_51 {dimension_numbers = #tpu.dot_dimension_numbers<[1], [0], [0], [1], [0, 0, 1, 1], [], []>} : vector<8x8xbf16>, vector<8x8xbf16>, vector<8x8xf32> -> vector<8x8xf32>
    %c0_52 = arith.constant 0 : index
    %c24_53 = arith.constant 24 : index
    %194 = vector.load %arg12[%c0_52, %c24_53] : memref<8x32xf32, #tpu.memory_space<vmem>>, vector<8x8xf32>
    tpu.vector_store %arg12[%c0_52, %c24_53], %193 {strides = array<i32>} : memref<8x32xf32, #tpu.memory_space<vmem>>, vector<8x8xf32>,
    %c0_54 = arith.constant 0 : index
    %c0_55 = arith.constant 0 : index
    %195 = vector.load %arg12[%c0_54, %c0_55] : memref<8x32xf32, #tpu.memory_space<vmem>>, vector<8x32xf32>
    %c0_56 = arith.constant 0 : index
    %c0_57 = arith.constant 0 : index
    %c0_58 = arith.constant 0 : index
    %196 = vector.load %arg10[%c0_56, %c0_57, %c0_58] : memref<1x8x32xf32, #tpu.memory_space<vmem>>, vector<1x8x32xf32>
    %197 = vector.shape_cast %196 : vector<1x8x32xf32> to vector<8x32xf32>
    %198 = vector.shape_cast %195 : vector<8x32xf32> to vector<1x8x32xf32>
    tpu.vector_store %arg10[%c0_56, %c0_57, %c0_58], %198 {strides = array<i32>} : memref<1x8x32xf32, #tpu.memory_space<vmem>>, vector<1x8x32xf32>,
    return
  }
  func.func @transform_0(%arg0: i32, %arg1: i32) -> (i32, i32, i32) {
    %c0_i32 = arith.constant 0 : i32
    %c0_i32_0 = arith.constant 0 : i32
    %c0_i32_1 = arith.constant 0 : i32
    return %arg0, %c0_i32, %c0_i32_0 : i32, i32, i32
  }
  func.func @transform_1(%arg0: i32, %arg1: i32) -> (i32, i32) {
    %c0_i32 = arith.constant 0 : i32
    %c0_i32_0 = arith.constant 0 : i32
    %c0_i32_1 = arith.constant 0 : i32
    return %c0_i32, %c0_i32_0 : i32, i32
  }
  func.func @transform_2(%arg0: i32, %arg1: i32) -> (i32, i32) {
    %c0_i32 = arith.constant 0 : i32
    %c0_i32_0 = arith.constant 0 : i32
    %c0_i32_1 = arith.constant 0 : i32
    return %c0_i32, %c0_i32_0 : i32, i32
  }
  func.func @transform_3(%arg0: i32, %arg1: i32) -> (i32, i32, i32, i32) {
    %c0_i32 = arith.constant 0 : i32
    %c0_i32_0 = arith.constant 0 : i32
    %c0_i32_1 = arith.constant 0 : i32
    return %arg0, %c0_i32, %arg1, %c0_i32_0 : i32, i32, i32, i32
  }
  func.func @transform_4(%arg0: i32, %arg1: i32) -> (i32, i32, i32, i32) {
    %c0_i32 = arith.constant 0 : i32
    %c0_i32_0 = arith.constant 0 : i32
    %c0_i32_1 = arith.constant 0 : i32
    %c0_i32_2 = arith.constant 0 : i32
    return %arg0, %c0_i32, %c0_i32_0, %c0_i32_1 : i32, i32, i32, i32
  }
  func.func @transform_5(%arg0: i32, %arg1: i32) -> i32 {
    %c0_i32 = arith.constant 0 : i32
    %c0_i32_0 = arith.constant 0 : i32
    return %c0_i32 : i32
  }
  func.func @transform_6(%arg0: i32, %arg1: i32) -> i32 {
    %c0_i32 = arith.constant 0 : i32
    %c0_i32_0 = arith.constant 0 : i32
    return %c0_i32 : i32
  }
  func.func @transform_7(%arg0: i32, %arg1: i32) -> i32 {
    %c0_i32 = arith.constant 0 : i32
    %c0_i32_0 = arith.constant 0 : i32
    return %c0_i32 : i32
  }
  func.func @transform_8(%arg0: i32, %arg1: i32) -> (i32, i32, i32) {
    %c0_i32 = arith.constant 0 : i32
    %c0_i32_0 = arith.constant 0 : i32
    return %arg0, %arg1, %c0_i32 : i32, i32, i32
  }
}

</mosaic_0001>

<llo_original>
// kernel: tpu_custom_call.1
$region0: #{tpu_custom_call.1}
  #allocation0 [shape = 'u32[]', space=smem, size = 0x4, offset = 0x4, fixed_abs, tag = 'smem constant byte address 0x4 - core index']
  #allocation1 [shape = 'u32[144,128]{1,0:T(1,128)}', space=vmem, size = 0x12000, scoped, tag = 'internal scratch']
  #allocation2 [shape = 'bf16[8,96]{1,0:T(8,128)(2,1)}', space=vmem, size = 0x800, scoped, tag = 'scratch operand']
  #allocation3 [shape = 'f32[8,32]{1,0:T(8,128)}', space=vmem, size = 0x1000, scoped, tag = 'scratch operand']
  %s0 = inlined_call_operand.hbm [shape: f32[2,8,32], index: 0, kind: input, shape index: {}]
  %s1 = inlined_call_operand.hbm [shape: bf16[32,96], index: 1, kind: input, shape index: {}]
  %s2 = inlined_call_operand.vmem [shape: f32[1,96], index: 2, kind: input, shape index: {}]
  %s3 = inlined_call_operand.vmem [shape: s8[2,1,8,8], index: 3, kind: input, shape index: {}]
  %s4 = inlined_call_operand.vmem [shape: f32[2,1,1,8], index: 4, kind: input, shape index: {}]
  %s5 = inlined_call_operand.vmem [shape: f32[4], index: 5, kind: input, shape index: {}]
  %s6 = inlined_call_operand.vmem [shape: f32[4], index: 6, kind: input, shape index: {}]
  %s7 = inlined_call_operand.vmem [shape: f32[4], index: 7, kind: input, shape index: {}]
  %s8 = inlined_call_operand.hbm [shape: f32[2,8,32], index: 8, kind: output, shape index: {}]
  %s9 = sld [smem:[#allocation0]]
  $region89: #{tpu_custom_call.1} parent=0
    _
  %s11 = ssub.s32 1, %s9
  %s12 = scalar_select 0, %s11, %s9
  $region1: #{tpu_custom_call.1} parent=0
    #allocation4 [shape = 'u8[8192]{0}', space=vmem, size = 0x2000, scoped, tag = 'input window, operand 0']
    #allocation5 [shape = 's32[2]{0}', space=sflag, size = 0x8, scoped, tag = 'scoped memory for tpu_custom_call.1']
    #allocation6 [shape = 's32[2]{0}', space=sflag, size = 0x8, scoped, tag = 'scoped memory for tpu_custom_call.1']
    #allocation7 [shape = 's32[2]{0}', space=sflag, size = 0x8, scoped, tag = 'scoped memory for tpu_custom_call.1']
    #allocation8 [shape = 'u8[8192]{0}', space=vmem, size = 0x2000, scoped, tag = 'input window, operand 1, single buffered']
    #allocation9 [shape = 's32[1]{0}', space=sflag, size = 0x4, scoped, tag = 'scoped memory for tpu_custom_call.1']
    #allocation10 [shape = 'u8[512]{0}', space=smem, size = 0x200, scoped, tag = 'input window, operand 5, single buffered']
    #allocation11 [shape = 'u8[512]{0}', space=smem, size = 0x200, scoped, tag = 'input window, operand 6, single buffered']
    #allocation12 [shape = 's32[1]{0}', space=sflag, size = 0x4, scoped, tag = 'scoped memory for tpu_custom_call.1']
    #allocation13 [shape = 'u8[512]{0}', space=smem, size = 0x200, scoped, tag = 'input window, operand 7, single buffered']
    #allocation14 [shape = 'u8[8192]{0}', space=vmem, size = 0x2000, scoped, tag = 'output window, operand 0']
    %13 = vsyncpa [#allocation5], 0
    %s14 = scalar_lea.sflag [#allocation5], 1
    %15 = vsyncpa %s14, 0
    %16 = vsyncpa [#allocation9], 0
    %17 = vsyncpa [#allocation7], 0
    %18 = vsyncpa [#allocation12], 0
    %19 = vsyncpa [#allocation6], 0
    %s20 = scalar_lea.sflag [#allocation6], 1
    %21 = vsyncpa %s20, 0
    loop: start=0, step=1, limit=4
    $region2: #{tpu_custom_call.1} parent=1 // loop_pre_header
      _
    $region3: #{tpu_custom_call.1} parent=1 // loop_header
      %s23 = sphi 0, %s27
      %p24 = scmp.ge.s32.totalorder %s23, 4
      %s30 = sphi 0, %s42
      %s31 = sphi 0, %s38
      %s32 = sphi 0, %s30
      %s33 = sphi 0, %s31
      %s34 = sphi 0, %s32
      %s35 = sphi 0, %s33
      %s45 = sphi 0, %s47
      %s48 = sphi 0, %s45
      %s49 = sphi 0, %s48
      %s65 = sphi 0, %s49
      %s69 = sphi 0, %s69
      %s71 = sphi 0, %s69
      %s72 = sphi 0, %s71
      %s86 = sphi 0, %s72
      %s90 = sphi 0, %s90
      %s92 = sphi 0, %s90
      %s93 = sphi 0, %s92
      %s107 = sphi 0, %s93
      %s115 = sphi 0, %s117
      %s118 = sphi 0, %s115
      %s119 = sphi 0, %s118
      %s135 = sphi 0, %s119
      %s141 = sphi 0, %s143
      %s144 = sphi 0, %s141
      %s145 = sphi 0, %s144
      %s161 = sphi 0, %s145
      %s165 = sphi 0, %s165
      %s167 = sphi 0, %s165
      %s168 = sphi 0, %s167
      %s182 = sphi 0, %s168
      %s186 = sphi 0, %s186
      %s188 = sphi 0, %s186
      %s189 = sphi 0, %s188
      %s203 = sphi 0, %s189
      %s207 = sphi 0, %s207
      %s209 = sphi 0, %s207
      %s210 = sphi 0, %s209
      %s224 = sphi 0, %s210
      %s232 = sphi 0, %s234
      %s235 = sphi 0, %s232
      %s236 = sphi 0, %s235
      %s252 = sphi 0, %s236
    $region4: #{tpu_custom_call.1} parent=1 // loop_header_branch
      %26 = sbr.rel (%p24) target = $region8
    $region5: #{tpu_custom_call.1} parent=1 // loop_body
      %s28 = ssub.s32 %s23, 1
      %s29 = ssub.s32 %s23, 2
      %s36 = sadd.s32 1, %s31
      %p37 = scmp.ge.s32.totalorder %s36, 1
      %s38 = scalar_select %p37, 0, %s36
      %s39 = sadd.s32 1, %s30
      %s40 = scalar_select %p37, %s39, %s30
      %p41 = scmp.ge.s32.totalorder %s40, 2
      %s42 = scalar_select %p41, 0, %s40
      %s43 = ssub.s32 %s30, %s42
      %p44 = scmp.eq.s32.totalorder %s43, 0
      %s46 = sadd.s32 %s45, 1
      %s47 = scalar_select %p44, %s45, %s46
      %p50 = pneg %p44
      %p51 = scmp.eq.s32.totalorder %s23, 1
      %p52 = por %p50, %p51
      %p53 = scmp.ne.s32.totalorder %s45, %s48
      %p54 = scmp.eq.s32.totalorder %s23, 0
      %p55 = por %p53, %p54
      %p56 = scmp.ne.s32.totalorder %s45, %s48
      %p57 = scmp.eq.s32.totalorder %s28, 1
      %p58 = por %p56, %p57
      %p59 = scmp.ne.s32.totalorder %s48, %s49
      %p60 = scmp.eq.s32.totalorder %s28, 0
      %p61 = por %p59, %p60
      %p62 = scmp.ne.s32.totalorder %s48, %s49
      %p63 = scmp.eq.s32.totalorder %s29, 1
      %p64 = por %p62, %p63
      %p66 = scmp.ne.s32.totalorder %s49, %s65
      %p67 = scmp.eq.s32.totalorder %s29, 0
      %p68 = por %p66, %p67
      %s70 = sadd.s32 %s69, 1
      %p73 = scmp.eq.s32.totalorder %s23, 1
      %p74 = scmp.ne.s32.totalorder %s69, %s71
      %p75 = scmp.eq.s32.totalorder %s23, 0
      %p76 = por %p74, %p75
      %p77 = scmp.ne.s32.totalorder %s69, %s71
      %p78 = scmp.eq.s32.totalorder %s28, 1
      %p79 = por %p77, %p78
      %p80 = scmp.ne.s32.totalorder %s71, %s72
      %p81 = scmp.eq.s32.totalorder %s28, 0
      %p82 = por %p80, %p81
      %p83 = scmp.ne.s32.totalorder %s71, %s72
      %p84 = scmp.eq.s32.totalorder %s29, 1
      %p85 = por %p83, %p84
      %p87 = scmp.ne.s32.totalorder %s72, %s86
      %p88 = scmp.eq.s32.totalorder %s29, 0
      %p89 = por %p87, %p88
      %s91 = sadd.s32 %s90, 1
      %p94 = scmp.eq.s32.totalorder %s23, 1
      %p95 = scmp.ne.s32.totalorder %s90, %s92
      %p96 = scmp.eq.s32.totalorder %s23, 0
      %p97 = por %p95, %p96
      %p98 = scmp.ne.s32.totalorder %s90, %s92
      %p99 = scmp.eq.s32.totalorder %s28, 1
      %p100 = por %p98, %p99
      %p101 = scmp.ne.s32.totalorder %s92, %s93
      %p102 = scmp.eq.s32.totalorder %s28, 0
      %p103 = por %p101, %p102
      %p104 = scmp.ne.s32.totalorder %s92, %s93
      %p105 = scmp.eq.s32.totalorder %s29, 1
      %p106 = por %p104, %p105
      %p108 = scmp.ne.s32.totalorder %s93, %s107
      %p109 = scmp.eq.s32.totalorder %s29, 0
      %p110 = por %p108, %p109
      %s111 = ssub.s32 %s30, %s42
      %s112 = ssub.s32 %s31, %s38
      %s113 = sor.u32 %s111, %s112
      %p114 = scmp.eq.s32.totalorder %s113, 0
      %s116 = sadd.s32 %s115, 1
      %s117 = scalar_select %p114, %s115, %s116
      %p120 = pneg %p114
      %p121 = scmp.eq.s32.totalorder %s23, 1
      %p122 = por %p120, %p121
      %p123 = scmp.ne.s32.totalorder %s115, %s118
      %p124 = scmp.eq.s32.totalorder %s23, 0
      %p125 = por %p123, %p124
      %p126 = scmp.ne.s32.totalorder %s115, %s118
      %p127 = scmp.eq.s32.totalorder %s28, 1
      %p128 = por %p126, %p127
      %p129 = scmp.ne.s32.totalorder %s118, %s119
      %p130 = scmp.eq.s32.totalorder %s28, 0
      %p131 = por %p129, %p130
      %p132 = scmp.ne.s32.totalorder %s118, %s119
      %p133 = scmp.eq.s32.totalorder %s29, 1
      %p134 = por %p132, %p133
      %p136 = scmp.ne.s32.totalorder %s119, %s135
      %p137 = scmp.eq.s32.totalorder %s29, 0
      %p138 = por %p136, %p137
      %s139 = ssub.s32 %s30, %s42
      %p140 = scmp.eq.s32.totalorder %s139, 0
      %s142 = sadd.s32 %s141, 1
      %s143 = scalar_select %p140, %s141, %s142
      %p146 = pneg %p140
      %p147 = scmp.eq.s32.totalorder %s23, 1
      %p148 = por %p146, %p147
      %p149 = scmp.ne.s32.totalorder %s141, %s144
      %p150 = scmp.eq.s32.totalorder %s23, 0
      %p151 = por %p149, %p150
      %p152 = scmp.ne.s32.totalorder %s141, %s144
      %p153 = scmp.eq.s32.totalorder %s28, 1
      %p154 = por %p152, %p153
      %p155 = scmp.ne.s32.totalorder %s144, %s145
      %p156 = scmp.eq.s32.totalorder %s28, 0
      %p157 = por %p155, %p156
      %p158 = scmp.ne.s32.totalorder %s144, %s145
      %p159 = scmp.eq.s32.totalorder %s29, 1
      %p160 = por %p158, %p159
      %p162 = scmp.ne.s32.totalorder %s145, %s161
      %p163 = scmp.eq.s32.totalorder %s29, 0
      %p164 = por %p162, %p163
      %s166 = sadd.s32 %s165, 1
      %p169 = scmp.eq.s32.totalorder %s23, 1
      %p170 = scmp.ne.s32.totalorder %s165, %s167
      %p171 = scmp.eq.s32.totalorder %s23, 0
      %p172 = por %p170, %p171
      %p173 = scmp.ne.s32.totalorder %s165, %s167
      %p174 = scmp.eq.s32.totalorder %s28, 1
      %p175 = por %p173, %p174
      %p176 = scmp.ne.s32.totalorder %s167, %s168
      %p177 = scmp.eq.s32.totalorder %s28, 0
      %p178 = por %p176, %p177
      %p179 = scmp.ne.s32.totalorder %s167, %s168
      %p180 = scmp.eq.s32.totalorder %s29, 1
      %p181 = por %p179, %p180
      %p183 = scmp.ne.s32.totalorder %s168, %s182
      %p184 = scmp.eq.s32.totalorder %s29, 0
      %p185 = por %p183, %p184
      %s187 = sadd.s32 %s186, 1
      %p190 = scmp.eq.s32.totalorder %s23, 1
      %p191 = scmp.ne.s32.totalorder %s186, %s188
      %p192 = scmp.eq.s32.totalorder %s23, 0
      %p193 = por %p191, %p192
      %p194 = scmp.ne.s32.totalorder %s186, %s188
      %p195 = scmp.eq.s32.totalorder %s28, 1
      %p196 = por %p194, %p195
      %p197 = scmp.ne.s32.totalorder %s188, %s189
      %p198 = scmp.eq.s32.totalorder %s28, 0
      %p199 = por %p197, %p198
      %p200 = scmp.ne.s32.totalorder %s188, %s189
      %p201 = scmp.eq.s32.totalorder %s29, 1
      %p202 = por %p200, %p201
      %p204 = scmp.ne.s32.totalorder %s189, %s203
      %p205 = scmp.eq.s32.totalorder %s29, 0
      %p206 = por %p204, %p205
      %s208 = sadd.s32 %s207, 1
      %p211 = scmp.eq.s32.totalorder %s23, 1
      %p212 = scmp.ne.s32.totalorder %s207, %s209
      %p213 = scmp.eq.s32.totalorder %s23, 0
      %p214 = por %p212, %p213
      %p215 = scmp.ne.s32.totalorder %s207, %s209
      %p216 = scmp.eq.s32.totalorder %s28, 1
      %p217 = por %p215, %p216
      %p218 = scmp.ne.s32.totalorder %s209, %s210
      %p219 = scmp.eq.s32.totalorder %s28, 0
      %p220 = por %p218, %p219
      %p221 = scmp.ne.s32.totalorder %s209, %s210
      %p222 = scmp.eq.s32.totalorder %s29, 1
      %p223 = por %p221, %p222
      %p225 = scmp.ne.s32.totalorder %s210, %s224
      %p226 = scmp.eq.s32.totalorder %s29, 0
      %p227 = por %p225, %p226
      %s228 = ssub.s32 %s30, %s42
      %s229 = ssub.s32 %s31, %s38
      %s230 = sor.u32 %s228, %s229
      %p231 = scmp.eq.s32.totalorder %s230, 0
      %s233 = sadd.s32 %s232, 1
      %s234 = scalar_select %p231, %s232, %s233
      %p237 = pneg %p231
      %p238 = scmp.eq.s32.totalorder %s23, 1
      %p239 = por %p237, %p238
      %p240 = scmp.ne.s32.totalorder %s232, %s235
      %p241 = scmp.eq.s32.totalorder %s23, 0
      %p242 = por %p240, %p241
      %p243 = scmp.ne.s32.totalorder %s232, %s235
      %p244 = scmp.eq.s32.totalorder %s28, 1
      %p245 = por %p243, %p244
      %p246 = scmp.ne.s32.totalorder %s235, %s236
      %p247 = scmp.eq.s32.totalorder %s28, 0
      %p248 = por %p246, %p247
      %p249 = scmp.ne.s32.totalorder %s235, %s236
      %p250 = scmp.eq.s32.totalorder %s29, 1
      %p251 = por %p249, %p250
      %p253 = scmp.ne.s32.totalorder %s236, %s252
      %p254 = scmp.eq.s32.totalorder %s29, 0
      %p255 = por %p253, %p254
      %p256 = scmp.le.s32.totalorder 1, %s23
      %p257 = scmp.lt.s32.totalorder %s23, 3
      %p258 = pnand %p256, %p257
      %p259 = pneg %p258
      // Predicated region
      $region9: #{tpu_custom_call.1} parent=5 // pred_check
        _
      $region10: #{tpu_custom_call.1} parent=5 // pred_check_branch
        %261 = sbr.rel (%p258) target = $region12
      $region11: #{tpu_custom_call.1} parent=5 // pred_region
        %s262 = ssub.s32 %s23, 1
        // Predicated region
        $region13: #{tpu_custom_call.1} parent=11 // pred_check
          %p263 = pneg %p82
        $region14: #{tpu_custom_call.1} parent=11 // pred_check_branch
          %265 = sbr.rel (%p263) target = $region16
        $region15: #{tpu_custom_call.1} parent=11 // pred_region
          %s267 = ssub.s32 256, 256
          %268 = vsyncadd [#allocation9], %s267
          %s269 = sshll.u32 [#allocation8], 4
          %s270 = int_to_ptr.vmem [resolvable:$true] %s269
          %275 = dma.hbm_to_vmem [thread:$0]  %s1, 256, %s270, [#allocation9], 64, 64, 4
        $region16: #{tpu_custom_call.1} parent=11 // pred_fallthru
          _
        // Predicated region
        $region17: #{tpu_custom_call.1} parent=11 // pred_check
          %p276 = pneg %p103
        $region18: #{tpu_custom_call.1} parent=11 // pred_check_branch
          %278 = sbr.rel (%p276) target = $region20
        $region19: #{tpu_custom_call.1} parent=11 // pred_region
          _
        $region20: #{tpu_custom_call.1} parent=11 // pred_fallthru
          _
        // Predicated region
        $region21: #{tpu_custom_call.1} parent=11 // pred_check
          %p279 = pneg %p178
        $region22: #{tpu_custom_call.1} parent=11 // pred_check_branch
          %281 = sbr.rel (%p279) target = $region24
        $region23: #{tpu_custom_call.1} parent=11 // pred_region
          %s283 = ssub.s32 16, 16
          %284 = vsyncadd [#allocation7], %s283
          %s286 = sshll.u32 %s5, 4
          %s287 = int_to_ptr.vmem [resolvable:$true] %s286
          %289 = dma.vmem_to_smem %s287, 16, [#allocation10], [#allocation7]
        $region24: #{tpu_custom_call.1} parent=11 // pred_fallthru
          _
        // Predicated region
        $region25: #{tpu_custom_call.1} parent=11 // pred_check
          %p290 = pneg %p199
        $region26: #{tpu_custom_call.1} parent=11 // pred_check_branch
          %292 = sbr.rel (%p290) target = $region28
        $region27: #{tpu_custom_call.1} parent=11 // pred_region
          %s294 = ssub.s32 16, 16
          %295 = vsyncadd [#allocation12], %s294
          %s297 = sshll.u32 %s6, 4
          %s298 = int_to_ptr.vmem [resolvable:$true] %s297
          %300 = dma.vmem_to_smem %s298, 16, [#allocation11], [#allocation12]
        $region28: #{tpu_custom_call.1} parent=11 // pred_fallthru
          _
        // Predicated region
        $region29: #{tpu_custom_call.1} parent=11 // pred_check
          %p301 = pneg %p220
        $region30: #{tpu_custom_call.1} parent=11 // pred_check_branch
          %303 = sbr.rel (%p301) target = $region32
        $region31: #{tpu_custom_call.1} parent=11 // pred_region
          %s305 = ssub.s32 16, 16
          %306 = vsyncadd [#allocation12], %s305
          %s308 = sshll.u32 %s7, 4
          %s309 = int_to_ptr.vmem [resolvable:$true] %s308
          %311 = dma.vmem_to_smem %s309, 16, [#allocation13], [#allocation12]
        $region32: #{tpu_custom_call.1} parent=11 // pred_fallthru
          _
      $region12: #{tpu_custom_call.1} parent=5 // pred_fallthru
        _
      %p312 = scmp.lt.s32.totalorder %s23, 2
      // Predicated region
      $region33: #{tpu_custom_call.1} parent=5 // pred_check
        %p313 = pneg %p312
      $region34: #{tpu_custom_call.1} parent=5 // pred_check_branch
        %315 = sbr.rel (%p313) target = $region36
      $region35: #{tpu_custom_call.1} parent=5 // pred_region
        // Predicated region
        $region37: #{tpu_custom_call.1} parent=35 // pred_check
          %p316 = pneg %p55
        $region38: #{tpu_custom_call.1} parent=35 // pred_check_branch
          %318 = sbr.rel (%p316) target = $region40
        $region39: #{tpu_custom_call.1} parent=35 // pred_region
          %s319 = sand.u32 %s45, 1
          %s320 = scalar_lea.sflag [#allocation5], %s319
          %s321 = sand.u32 %s45, 1
          %s322 = smul.addr %s321, 8
          %s323 = scalar_lea.vmem [#allocation4], %s322
          %s325 = ssub.s32 128, 128
          %326 = vsyncadd %s320, %s325
          %s327 = smul.addr %s30, 128
          %s328 = scalar_lea.hbm %s0, %s327
          %s330 = sshll.u32 %s323, 4
          %s331 = int_to_ptr.vmem [resolvable:$true] %s330
          %333 = dma.hbm_to_vmem [thread:$0]  %s328, 128, %s331, %s320
        $region40: #{tpu_custom_call.1} parent=35 // pred_fallthru
          _
        // Predicated region
        $region41: #{tpu_custom_call.1} parent=35 // pred_check
          %p334 = pneg %p125
        $region42: #{tpu_custom_call.1} parent=35 // pred_check_branch
          %336 = sbr.rel (%p334) target = $region44
        $region43: #{tpu_custom_call.1} parent=35 // pred_region
          %p337 = scmp.lt.s32.totalorder %s30, 1
          %s338 = scalar_select %p337, %s30, 1
          %p339 = scmp.lt.s32.totalorder %s31, 0
          %s340 = scalar_select %p339, %s31, 0
          %s341 = sadd.s32 %s340, %s338
          %s342 = smul.addr %s341, 2
          %s343 = scalar_lea.vmem %s3, %s342
        $region44: #{tpu_custom_call.1} parent=35 // pred_fallthru
          _
        // Predicated region
        $region45: #{tpu_custom_call.1} parent=35 // pred_check
          %p344 = pneg %p151
        $region46: #{tpu_custom_call.1} parent=35 // pred_check_branch
          %346 = sbr.rel (%p344) target = $region48
        $region47: #{tpu_custom_call.1} parent=35 // pred_region
          %p347 = scmp.lt.s32.totalorder %s30, 1
          %s348 = scalar_select %p347, %s30, 1
          %s349 = scalar_lea.vmem %s4, %s348
        $region48: #{tpu_custom_call.1} parent=35 // pred_fallthru
          _
      $region36: #{tpu_custom_call.1} parent=5 // pred_fallthru
        _
      %p350 = scmp.le.s32.totalorder 1, %s23
      %p351 = scmp.lt.s32.totalorder %s23, 3
      %p352 = pnand %p350, %p351
      %p353 = pneg %p352
      // Predicated region
      $region49: #{tpu_custom_call.1} parent=5 // pred_check
        _
      $region50: #{tpu_custom_call.1} parent=5 // pred_check_branch
        %355 = sbr.rel (%p352) target = $region52
      $region51: #{tpu_custom_call.1} parent=5 // pred_region
        %s356 = ssub.s32 %s23, 1
        %s357 = sand.u32 %s48, 1
        %s358 = scalar_lea.sflag [#allocation5], %s357
        %s359 = sand.u32 %s48, 1
        %s360 = smul.addr %s359, 8
        %s361 = scalar_lea.vmem [#allocation4], %s360
        // Predicated region
        $region53: #{tpu_custom_call.1} parent=51 // pred_check
          %p362 = pneg %p61
        $region54: #{tpu_custom_call.1} parent=51 // pred_check_branch
          %364 = sbr.rel (%p362) target = $region56
        $region55: #{tpu_custom_call.1} parent=51 // pred_region
          %365 = dma.done %s358, 128
        $region56: #{tpu_custom_call.1} parent=51 // pred_fallthru
          _
        // Predicated region
        $region57: #{tpu_custom_call.1} parent=51 // pred_check
          %p366 = pneg %p82
        $region58: #{tpu_custom_call.1} parent=51 // pred_check_branch
          %368 = sbr.rel (%p366) target = $region60
        $region59: #{tpu_custom_call.1} parent=51 // pred_region
          %369 = dma.done [#allocation9], 256
        $region60: #{tpu_custom_call.1} parent=51 // pred_fallthru
          _
        // Predicated region
        $region61: #{tpu_custom_call.1} parent=51 // pred_check
          %p370 = pneg %p178
        $region62: #{tpu_custom_call.1} parent=51 // pred_check_branch
          %372 = sbr.rel (%p370) target = $region64
        $region63: #{tpu_custom_call.1} parent=51 // pred_region
          %373 = dma.done [#allocation7], 16
        $region64: #{tpu_custom_call.1} parent=51 // pred_fallthru
          _
        // Predicated region
        $region65: #{tpu_custom_call.1} parent=51 // pred_check
          %p374 = pneg %p199
        $region66: #{tpu_custom_call.1} parent=51 // pred_check_branch
          %376 = sbr.rel (%p374) target = $region68
        $region67: #{tpu_custom_call.1} parent=51 // pred_region
          %377 = dma.done [#allocation12], 16
        $region68: #{tpu_custom_call.1} parent=51 // pred_fallthru
          _
        // Predicated region
        $region69: #{tpu_custom_call.1} parent=51 // pred_check
          %p378 = pneg %p220
        $region70: #{tpu_custom_call.1} parent=51 // pred_check_branch
          %380 = sbr.rel (%p378) target = $region72
        $region71: #{tpu_custom_call.1} parent=51 // pred_region
          %381 = dma.done [#allocation12], 16
        $region72: #{tpu_custom_call.1} parent=51 // pred_fallthru
          _
        %382 = sfence
        %s383 = sand.u32 %s48, 1
        %s384 = scalar_lea.sflag [#allocation5], %s383
        %s385 = sand.u32 %s48, 1
        %s386 = smul.addr %s385, 8
        %s387 = scalar_lea.vmem [#allocation4], %s386
        %p388 = pneg %p61
        %p389 = pneg %p58
        %p390 = pneg %p82
        %p391 = pneg %p79
        %p392 = pneg %p103
        %p393 = pneg %p100
        %p394 = scmp.lt.s32.totalorder %s32, 1
        %s395 = scalar_select %p394, %s32, 1
        %p396 = scmp.lt.s32.totalorder %s33, 0
        %s397 = scalar_select %p396, %s33, 0
        %s398 = sadd.s32 %s397, %s395
        %s399 = smul.addr %s398, 2
        %s400 = scalar_lea.vmem %s3, %s399
        %p401 = pneg %p131
        %p402 = pneg %p128
        %p403 = scmp.lt.s32.totalorder %s32, 1
        %s404 = scalar_select %p403, %s32, 1
        %s405 = scalar_lea.vmem %s4, %s404
        %p406 = pneg %p157
        %p407 = pneg %p154
        %p408 = pneg %p178
        %p409 = pneg %p175
        %p410 = pneg %p199
        %p411 = pneg %p196
        %p412 = pneg %p220
        %p413 = pneg %p217
        %p414 = pneg %p248
        %p415 = pneg %p245
        %s416 = sand.u32 %s235, 1
        %s417 = scalar_lea.sflag [#allocation6], %s416
        %s418 = sand.u32 %s235, 1
        %s419 = smul.addr %s418, 8
        %s420 = scalar_lea.vmem [#allocation14], %s419
        %p421 = scmp.lt.s32.totalorder %s32, 1
        %s422 = scalar_select %p421, %s32, 1
        %p423 = scmp.lt.s32.totalorder %s33, 0
        %s424 = scalar_select %p423, %s33, 0
        %s425 = sadd.s32 %s424, %s422
        %s426 = smul.addr %s425, 2
        %s427 = scalar_lea.vmem %s3, %s426
        %p428 = scmp.lt.s32.totalorder %s32, 1
        %s429 = scalar_select %p428, %s32, 1
        %s430 = scalar_lea.vmem %s4, %s429
        %p432 = scmp.eq.s32.totalorder %s33, 0
        // Predicated region
        $region73: #{tpu_custom_call.1} parent=51 // pred_check
          %p433 = pneg %p432
        $region74: #{tpu_custom_call.1} parent=51 // pred_check_branch
          %435 = sbr.rel (%p433) target = $region76
        $region75: #{tpu_custom_call.1} parent=51 // pred_region
          %v436 = vld [vmem:[%s361] sm:$0xff]
          %v437 = vpack.c.bf16 %v436, %v436
          %v438 = vld [vmem:[#allocation8] sm:$0xf]
          %v439 = vld [vmem:[#allocation8 + $0x4] sm:$0xf]
          %v440 = vld [vmem:[#allocation8 + $0x8] sm:$0xf]
          %v441 = vld [vmem:[#allocation8 + $0xc] sm:$0xf]
          %v442 = vld [vmem:[%s2] sm:$0x1]
          %v444 = vlaneseq
          %v445 = vshrl.u32 %v444, 7
          %v446 = vsub.s32 0, %v445
          %v447 = vrot.slane %v442, %v446
          %v453 = vunpack.c.l.b16 %v438
          %v454 = vunpack.c.l.b16 %v439
          %v455 = vunpack.c.l.b16 %v440
          %v456 = vunpack.c.l.b16 %v441
          %v457 = vpack.c.b16 %v454, %v453
          %v458 = vpack.c.b16 %v456, %v455
          %vm461 = vcmask 261120
          %v463 = vsel %vm461, %v437, 0
          %465 = vmatprep.subr.bf16.mxu0 0
          %466 = vmatpush1.bf16.msra.mxu0 0
          %467 = vmatprep.subr.bf16.mxu0 0
          %468 = vmatpush1.bf16.msra.mxu0 0
          %469 = vmatprep.subr.bf16.mxu0 0
          %470 = vmatpush1.bf16.msra.mxu0 0
          %471 = vmatprep.subr.bf16.mxu0 0
          %472 = vmatpush1.bf16.msra.mxu0 0
          %473 = vmatprep.subr.bf16.mxu0 0
          %474 = vmatpush1.bf16.msra.mxu0 0
          %475 = vmatprep.subr.bf16.mxu0 0
          %476 = vmatpush1.bf16.msra.mxu0 0
          %477 = vmatprep.subr.bf16.mxu0 0
          %478 = vmatpush1.bf16.msra.mxu0 %v458
          %479 = vmatprep.subr.bf16.mxu0 0
          %480 = vmatpush1.bf16.msra.mxu0 %v457
          %481 = vmatprep.subr.bf16.mxu0 0
          %482 = vmatpush2.bf16.msra.mxu0 0
          %483 = vmatprep.subr.bf16.mxu0 0
          %484 = vmatpush2.bf16.msra.mxu0 0
          %485 = vmatprep.subr.bf16.mxu0 0
          %486 = vmatpush2.bf16.msra.mxu0 0
          %487 = vmatprep.subr.bf16.mxu0 0
          %488 = vmatpush2.bf16.msra.mxu0 0
          %489 = vmatprep.subr.bf16.mxu0 0
          %490 = vmatpush2.bf16.msra.mxu0 0
          %491 = vmatprep.subr.bf16.mxu0 0
          %492 = vmatpush2.bf16.msra.mxu0 0
          %493 = vmatprep.subr.bf16.mxu0 0
          %494 = vmatpush2.bf16.msra.mxu0 0
          %495 = vmatprep.subr.bf16.mxu0 0
          %496 = vmatpush2.bf16.msra.mxu0 0
          %497 = vmatprep.mubr.bf16.mxu0 0
          %498 = vmatmul.mubr.bf16.gmra.mxu0 %v463
          %v499 = vpop.f32.mrf.mxu0
          %v500 = vadd.f32 %v447, %v499
          %v501 = vpop.f32.mrf.mxu0
          %v502 = vpop.f32.mrf.mxu0
          %v503 = vpop.f32.mrf.mxu0
          %504 = vdwg.mxu0
          %v505 = vpack.c.bf16 %v500, %v500
          %vm506 = vcmask 781312
          %507 = vst.msk [vmem:[#allocation2] sm:$0xf] %vm506, %v505
        $region76: #{tpu_custom_call.1} parent=51 // pred_fallthru
          _
        %v508 = vld [vmem:[%s427] sm:$0x3]
        %v509 = vunpack.c.0.s8 %v508
        %v510 = vld [vmem:[%s430] sm:$0x1]
        %vm511 = vcmp.eq.s32.totalorder %v509, 2
        %v512 = vsel %vm511, 1, 0
        %v513 = vcvt.s32.f32 %v512
        %vm514 = vcmp.eq.s32.totalorder %v509, 5
        %v515 = vsel %vm514, 1, 0
        %v516 = vcvt.s32.f32 %v515
        %v517 = vadd.f32 %v513, %v516
        %vm518 = vcmp.eq.s32.totalorder %v509, 9
        %v519 = vsel %vm518, 1, 0
        %v520 = vcvt.s32.f32 %v519
        %v521 = vadd.f32 %v517, %v520
        %vm522 = vcmp.eq.s32.totalorder %v509, 12
        %v523 = vsel %vm522, 1, 0
        %v524 = vcvt.s32.f32 %v523
        %v525 = vadd.f32 %v521, %v524
        %vm526 = vcmp.eq.s32.totalorder %v509, 3
        %v527 = vsel %vm526, 1, 0
        %v528 = vcvt.s32.f32 %v527
        %v529 = vadd.f32 %v528, %v516
        %vm530 = vcmp.eq.s32.totalorder %v509, 10
        %v531 = vsel %vm530, 1, 0
        %v532 = vcvt.s32.f32 %v531
        %v533 = vadd.f32 %v529, %v532
        %v534 = vadd.f32 %v533, %v524
        %vm535 = vcmp.eq.s32.totalorder %v509, 7
        %v536 = vsel %vm535, 1, 0
        %v537 = vcvt.s32.f32 %v536
        %v538 = vadd.f32 %v537, %v520
        %v539 = vadd.f32 %v538, %v532
        %v540 = vadd.f32 %v539, %v524
        %s541 = smul.u32 %s33, 8
        %s542 = sshra.s32 %s541, 3
        %s543 = sand.u32 %s541, 7
        %s544 = smul.addr %s542, 4
        %s545 = scalar_lea.vmem [#allocation2], %s544
        %v546 = vld [vmem:[%s545] sm:$0xf]
        %v547 = vld [vmem:[#allocation2] sm:$0xf]
        %s548 = sld [smem:[#allocation10]]
        %v549 = vstv %s548
        %v550 = vmul.f32 %v549, %v525
        %s551 = sld [smem:[#allocation11]]
        %v552 = vstv %s551
        %v553 = vmul.f32 %v552, %v534
        %v554 = vadd.f32 %v550, %v553
        %s555 = sld [smem:[#allocation13]]
        %v556 = vstv %s555
        %v557 = vmul.f32 %v556, %v540
        %v558 = vadd.f32 %v554, %v557
        %v560 = vunpack.c.l.b16 %v547
        %v561 = vpack.c.b16 %v560, %v560
        %562 = vrot.lane.b32.xlu0 %v561, 96
        %v563 = vpop.permute.xlu0 %562
        %vm564 = vcmask 64512
        %v566 = vsel %vm564, %v546, 0
        %v569 = vsel %vm564, %v563, 0
        %571 = vmatprep.subr.bf16.mxu0 0
        %572 = vmatpush1.bf16.xpose.msra.mxu0 0
        %573 = vmatprep.subr.bf16.mxu0 0
        %574 = vmatpush1.bf16.xpose.msra.mxu0 0
        %575 = vmatprep.subr.bf16.mxu0 0
        %576 = vmatpush1.bf16.xpose.msra.mxu0 0
        %577 = vmatprep.subr.bf16.mxu0 0
        %578 = vmatpush1.bf16.xpose.msra.mxu0 0
        %579 = vmatprep.subr.bf16.mxu0 0
        %580 = vmatpush1.bf16.xpose.msra.mxu0 0
        %581 = vmatprep.subr.bf16.mxu0 0
        %582 = vmatpush1.bf16.xpose.msra.mxu0 0
        %583 = vmatprep.subr.bf16.mxu0 0
        %584 = vmatpush1.bf16.xpose.msra.mxu0 0
        %585 = vmatprep.subr.bf16.mxu0 0
        %586 = vmatpush1.bf16.xpose.msra.mxu0 %v569
        %587 = vmatprep.subr.bf16.mxu0 0
        %588 = vmatpush2.bf16.xpose.msra.mxu0 0
        %589 = vmatprep.subr.bf16.mxu0 0
        %590 = vmatpush2.bf16.xpose.msra.mxu0 0
        %591 = vmatprep.subr.bf16.mxu0 0
        %592 = vmatpush2.bf16.xpose.msra.mxu0 0
        %593 = vmatprep.subr.bf16.mxu0 0
        %594 = vmatpush2.bf16.xpose.msra.mxu0 0
        %595 = vmatprep.subr.bf16.mxu0 0
        %596 = vmatpush2.bf16.xpose.msra.mxu0 0
        %597 = vmatprep.subr.bf16.mxu0 0
        %598 = vmatpush2.bf16.xpose.msra.mxu0 0
        %599 = vmatprep.subr.bf16.mxu0 0
        %600 = vmatpush2.bf16.xpose.msra.mxu0 0
        %601 = vmatprep.subr.bf16.mxu0 0
        %602 = vmatpush2.bf16.xpose.msra.mxu0 0
        %603 = vmatprep.mubr.bf16.mxu0 0
        %604 = vmatmul.mubr.bf16.gmra.mxu0 %v566
        %v605 = vpop.f32.mrf.mxu0
        %v606 = vadd.f32 %v558, %v605
        %v607 = vpop.f32.mrf.mxu0
        %v608 = vpop.f32.mrf.mxu0
        %v609 = vpop.f32.mrf.mxu0
        %610 = vdwg.mxu0
        %v612 = vlaneseq
        %v613 = vshrl.u32 %v612, 7
        %v614 = vsub.s32 0, %v613
        %v615 = vrot.slane %v510, %v614
        %v617 = vadd.f32 %v606, %v615
        %v618 = vsel %vm564, %v617, -inf
        %619 = vmax.xlane.f32.xlu0 %v618
        %v620 = vpop.xlane.xlu0 %619
        %v621 = vsub.f32 %v617, %v620
        %v622 = vmul.f32 %v621, 1.442695
        %v623 = vpow.pop %v622
        %v624 = vsel %vm564, %v623, 0.0
        %625 = vadd.xlane.f32.xlu0 %v624
        %v626 = vpop.xlane.xlu0 %625
        %v627 = vrcp.pop %v626
        %v628 = vmul.f32 %v623, %v627
        %v629 = vpack.c.bf16 %v628, %v628
        %630 = vrot.lane.b32.xlu0 %v561, 64
        %v631 = vpop.permute.xlu0 %630
        %v633 = vsel %vm564, %v629, 0
        %vm635 = vcmask 1043456
        %v637 = vsel %vm635, %v631, 0
        %639 = vmatprep.subr.bf16.mxu0 0
        %640 = vmatpush1.bf16.msra.mxu0 0
        %641 = vmatprep.subr.bf16.mxu0 0
        %642 = vmatpush1.bf16.msra.mxu0 0
        %643 = vmatprep.subr.bf16.mxu0 0
        %644 = vmatpush1.bf16.msra.mxu0 0
        %645 = vmatprep.subr.bf16.mxu0 0
        %646 = vmatpush1.bf16.msra.mxu0 0
        %647 = vmatprep.subr.bf16.mxu0 0
        %648 = vmatpush1.bf16.msra.mxu0 0
        %649 = vmatprep.subr.bf16.mxu0 0
        %650 = vmatpush1.bf16.msra.mxu0 0
        %651 = vmatprep.subr.bf16.mxu0 0
        %652 = vmatpush1.bf16.msra.mxu0 0
        %653 = vmatprep.subr.bf16.mxu0 0
        %654 = vmatpush1.bf16.msra.mxu0 %v637
        %655 = vmatprep.subr.bf16.mxu0 0
        %656 = vmatpush2.bf16.msra.mxu0 0
        %657 = vmatprep.subr.bf16.mxu0 0
        %658 = vmatpush2.bf16.msra.mxu0 0
        %659 = vmatprep.subr.bf16.mxu0 0
        %660 = vmatpush2.bf16.msra.mxu0 0
        %661 = vmatprep.subr.bf16.mxu0 0
        %662 = vmatpush2.bf16.msra.mxu0 0
        %663 = vmatprep.subr.bf16.mxu0 0
        %664 = vmatpush2.bf16.msra.mxu0 0
        %665 = vmatprep.subr.bf16.mxu0 0
        %666 = vmatpush2.bf16.msra.mxu0 0
        %667 = vmatprep.subr.bf16.mxu0 0
        %668 = vmatpush2.bf16.msra.mxu0 0
        %669 = vmatprep.subr.bf16.mxu0 0
        %670 = vmatpush2.bf16.msra.mxu0 0
        %671 = vmatprep.mubr.bf16.mxu0 0
        %672 = vmatmul.mubr.bf16.gmra.mxu0 %v633
        %v673 = vpop.f32.mrf.mxu0
        %v674 = vadd.f32 0.0, %v673
        %v675 = vpop.f32.mrf.mxu0
        %v676 = vpop.f32.mrf.mxu0
        %v677 = vpop.f32.mrf.mxu0
        %678 = vdwg.mxu0
        %679 = vst.msk [vmem:[#allocation3] sm:$0xff] %vm564, %v674
        %v680 = vld [vmem:[%s545] sm:$0xf]
        %v681 = vld [vmem:[#allocation2] sm:$0xf]
        %s682 = sld [smem:[#allocation10 + $0x1]]
        %v683 = vstv %s682
        %v684 = vmul.f32 %v683, %v525
        %s685 = sld [smem:[#allocation11 + $0x1]]
        %v686 = vstv %s685
        %v687 = vmul.f32 %v686, %v534
        %v688 = vadd.f32 %v684, %v687
        %s689 = sld [smem:[#allocation13 + $0x1]]
        %v690 = vstv %s689
        %v691 = vmul.f32 %v690, %v540
        %v692 = vadd.f32 %v688, %v691
        %v694 = vunpack.c.l.b16 %v680
        %v695 = vpack.c.b16 %v694, %v694
        %696 = vrot.lane.b32.xlu0 %v695, 120
        %v697 = vpop.permute.xlu0 %696
        %v699 = vunpack.c.l.b16 %v681
        %v700 = vpack.c.b16 %v699, %v699
        %701 = vrot.lane.b32.xlu0 %v700, 88
        %v702 = vpop.permute.xlu0 %701
        %v704 = vsel %vm564, %v697, 0
        %v707 = vsel %vm564, %v702, 0
        %709 = vmatprep.subr.bf16.mxu0 0
        %710 = vmatpush1.bf16.xpose.msra.mxu0 0
        %711 = vmatprep.subr.bf16.mxu0 0
        %712 = vmatpush1.bf16.xpose.msra.mxu0 0
        %713 = vmatprep.subr.bf16.mxu0 0
        %714 = vmatpush1.bf16.xpose.msra.mxu0 0
        %715 = vmatprep.subr.bf16.mxu0 0
        %716 = vmatpush1.bf16.xpose.msra.mxu0 0
        %717 = vmatprep.subr.bf16.mxu0 0
        %718 = vmatpush1.bf16.xpose.msra.mxu0 0
        %719 = vmatprep.subr.bf16.mxu0 0
        %720 = vmatpush1.bf16.xpose.msra.mxu0 0
        %721 = vmatprep.subr.bf16.mxu0 0
        %722 = vmatpush1.bf16.xpose.msra.mxu0 0
        %723 = vmatprep.subr.bf16.mxu0 0
        %724 = vmatpush1.bf16.xpose.msra.mxu0 %v707
        %725 = vmatprep.subr.bf16.mxu0 0
        %726 = vmatpush2.bf16.xpose.msra.mxu0 0
        %727 = vmatprep.subr.bf16.mxu0 0
        %728 = vmatpush2.bf16.xpose.msra.mxu0 0
        %729 = vmatprep.subr.bf16.mxu0 0
        %730 = vmatpush2.bf16.xpose.msra.mxu0 0
        %731 = vmatprep.subr.bf16.mxu0 0
        %732 = vmatpush2.bf16.xpose.msra.mxu0 0
        %733 = vmatprep.subr.bf16.mxu0 0
        %734 = vmatpush2.bf16.xpose.msra.mxu0 0
        %735 = vmatprep.subr.bf16.mxu0 0
        %736 = vmatpush2.bf16.xpose.msra.mxu0 0
        %737 = vmatprep.subr.bf16.mxu0 0
        %738 = vmatpush2.bf16.xpose.msra.mxu0 0
        %739 = vmatprep.subr.bf16.mxu0 0
        %740 = vmatpush2.bf16.xpose.msra.mxu0 0
        %741 = vmatprep.mubr.bf16.mxu0 0
        %742 = vmatmul.mubr.bf16.gmra.mxu0 %v704
        %v743 = vpop.f32.mrf.mxu0
        %v744 = vadd.f32 %v692, %v743
        %v745 = vpop.f32.mrf.mxu0
        %v746 = vpop.f32.mrf.mxu0
        %v747 = vpop.f32.mrf.mxu0
        %748 = vdwg.mxu0
        %v749 = vadd.f32 %v744, %v615
        %v750 = vsel %vm564, %v749, -inf
        %751 = vmax.xlane.f32.xlu0 %v750
        %v752 = vpop.xlane.xlu0 %751
        %v753 = vsub.f32 %v749, %v752
        %v754 = vmul.f32 %v753, 1.442695
        %v755 = vpow.pop %v754
        %v756 = vsel %vm564, %v755, 0.0
        %757 = vadd.xlane.f32.xlu0 %v756
        %v758 = vpop.xlane.xlu0 %757
        %v759 = vrcp.pop %v758
        %v760 = vmul.f32 %v755, %v759
        %v761 = vpack.c.bf16 %v760, %v760
        %762 = vrot.lane.b32.xlu0 %v700, 56
        %v763 = vpop.permute.xlu0 %762
        %v765 = vsel %vm564, %v761, 0
        %v768 = vsel %vm635, %v763, 0
        %770 = vmatprep.subr.bf16.mxu0 0
        %771 = vmatpush1.bf16.msra.mxu0 0
        %772 = vmatprep.subr.bf16.mxu0 0
        %773 = vmatpush1.bf16.msra.mxu0 0
        %774 = vmatprep.subr.bf16.mxu0 0
        %775 = vmatpush1.bf16.msra.mxu0 0
        %776 = vmatprep.subr.bf16.mxu0 0
        %777 = vmatpush1.bf16.msra.mxu0 0
        %778 = vmatprep.subr.bf16.mxu0 0
        %779 = vmatpush1.bf16.msra.mxu0 0
        %780 = vmatprep.subr.bf16.mxu0 0
        %781 = vmatpush1.bf16.msra.mxu0 0
        %782 = vmatprep.subr.bf16.mxu0 0
        %783 = vmatpush1.bf16.msra.mxu0 0
        %784 = vmatprep.subr.bf16.mxu0 0
        %785 = vmatpush1.bf16.msra.mxu0 %v768
        %786 = vmatprep.subr.bf16.mxu0 0
        %787 = vmatpush2.bf16.msra.mxu0 0
        %788 = vmatprep.subr.bf16.mxu0 0
        %789 = vmatpush2.bf16.msra.mxu0 0
        %790 = vmatprep.subr.bf16.mxu0 0
        %791 = vmatpush2.bf16.msra.mxu0 0
        %792 = vmatprep.subr.bf16.mxu0 0
        %793 = vmatpush2.bf16.msra.mxu0 0
        %794 = vmatprep.subr.bf16.mxu0 0
        %795 = vmatpush2.bf16.msra.mxu0 0
        %796 = vmatprep.subr.bf16.mxu0 0
        %797 = vmatpush2.bf16.msra.mxu0 0
        %798 = vmatprep.subr.bf16.mxu0 0
        %799 = vmatpush2.bf16.msra.mxu0 0
        %800 = vmatprep.subr.bf16.mxu0 0
        %801 = vmatpush2.bf16.msra.mxu0 0
        %802 = vmatprep.mubr.bf16.mxu0 0
        %803 = vmatmul.mubr.bf16.gmra.mxu0 %v765
        %v804 = vpop.f32.mrf.mxu0
        %v805 = vadd.f32 0.0, %v804
        %v806 = vpop.f32.mrf.mxu0
        %v807 = vpop.f32.mrf.mxu0
        %v808 = vpop.f32.mrf.mxu0
        %809 = vdwg.mxu0
        %811 = vrot.lane.b32.xlu0 %v805, 8
        %v812 = vpop.permute.xlu0 %811
        %vm814 = vcmask 130112
        %815 = vst.msk [vmem:[#allocation3] sm:$0xff] %vm814, %v812
        %v816 = vld [vmem:[%s545] sm:$0xf]
        %v817 = vld [vmem:[#allocation2] sm:$0xf]
        %s818 = sld [smem:[#allocation10 + $0x2]]
        %v819 = vstv %s818
        %v820 = vmul.f32 %v819, %v525
        %s821 = sld [smem:[#allocation11 + $0x2]]
        %v822 = vstv %s821
        %v823 = vmul.f32 %v822, %v534
        %v824 = vadd.f32 %v820, %v823
        %s825 = sld [smem:[#allocation13 + $0x2]]
        %v826 = vstv %s825
        %v827 = vmul.f32 %v826, %v540
        %v828 = vadd.f32 %v824, %v827
        %v830 = vunpack.c.l.b16 %v816
        %v831 = vpack.c.b16 %v830, %v830
        %832 = vrot.lane.b32.xlu0 %v831, 112
        %v833 = vpop.permute.xlu0 %832
        %v835 = vunpack.c.l.b16 %v817
        %v836 = vpack.c.b16 %v835, %v835
        %837 = vrot.lane.b32.xlu0 %v836, 80
        %v838 = vpop.permute.xlu0 %837
        %v840 = vsel %vm564, %v833, 0
        %v843 = vsel %vm564, %v838, 0
        %845 = vmatprep.subr.bf16.mxu0 0
        %846 = vmatpush1.bf16.xpose.msra.mxu0 0
        %847 = vmatprep.subr.bf16.mxu0 0
        %848 = vmatpush1.bf16.xpose.msra.mxu0 0
        %849 = vmatprep.subr.bf16.mxu0 0
        %850 = vmatpush1.bf16.xpose.msra.mxu0 0
        %851 = vmatprep.subr.bf16.mxu0 0
        %852 = vmatpush1.bf16.xpose.msra.mxu0 0
        %853 = vmatprep.subr.bf16.mxu0 0
        %854 = vmatpush1.bf16.xpose.msra.mxu0 0
        %855 = vmatprep.subr.bf16.mxu0 0
        %856 = vmatpush1.bf16.xpose.msra.mxu0 0
        %857 = vmatprep.subr.bf16.mxu0 0
        %858 = vmatpush1.bf16.xpose.msra.mxu0 0
        %859 = vmatprep.subr.bf16.mxu0 0
        %860 = vmatpush1.bf16.xpose.msra.mxu0 %v843
        %861 = vmatprep.subr.bf16.mxu0 0
        %862 = vmatpush2.bf16.xpose.msra.mxu0 0
        %863 = vmatprep.subr.bf16.mxu0 0
        %864 = vmatpush2.bf16.xpose.msra.mxu0 0
        %865 = vmatprep.subr.bf16.mxu0 0
        %866 = vmatpush2.bf16.xpose.msra.mxu0 0
        %867 = vmatprep.subr.bf16.mxu0 0
        %868 = vmatpush2.bf16.xpose.msra.mxu0 0
        %869 = vmatprep.subr.bf16.mxu0 0
        %870 = vmatpush2.bf16.xpose.msra.mxu0 0
        %871 = vmatprep.subr.bf16.mxu0 0
        %872 = vmatpush2.bf16.xpose.msra.mxu0 0
        %873 = vmatprep.subr.bf16.mxu0 0
        %874 = vmatpush2.bf16.xpose.msra.mxu0 0
        %875 = vmatprep.subr.bf16.mxu0 0
        %876 = vmatpush2.bf16.xpose.msra.mxu0 0
        %877 = vmatprep.mubr.bf16.mxu0 0
        %878 = vmatmul.mubr.bf16.gmra.mxu0 %v840
        %v879 = vpop.f32.mrf.mxu0
        %v880 = vadd.f32 %v828, %v879
        %v881 = vpop.f32.mrf.mxu0
        %v882 = vpop.f32.mrf.mxu0
        %v883 = vpop.f32.mrf.mxu0
        %884 = vdwg.mxu0
        %v885 = vadd.f32 %v880, %v615
        %v886 = vsel %vm564, %v885, -inf
        %887 = vmax.xlane.f32.xlu0 %v886
        %v888 = vpop.xlane.xlu0 %887
        %v889 = vsub.f32 %v885, %v888
        %v890 = vmul.f32 %v889, 1.442695
        %v891 = vpow.pop %v890
        %v892 = vsel %vm564, %v891, 0.0
        %893 = vadd.xlane.f32.xlu0 %v892
        %v894 = vpop.xlane.xlu0 %893
        %v895 = vrcp.pop %v894
        %v896 = vmul.f32 %v891, %v895
        %v897 = vpack.c.bf16 %v896, %v896
        %898 = vrot.lane.b32.xlu0 %v836, 48
        %v899 = vpop.permute.xlu0 %898
        %v901 = vsel %vm564, %v897, 0
        %v904 = vsel %vm635, %v899, 0
        %906 = vmatprep.subr.bf16.mxu0 0
        %907 = vmatpush1.bf16.msra.mxu0 0
        %908 = vmatprep.subr.bf16.mxu0 0
        %909 = vmatpush1.bf16.msra.mxu0 0
        %910 = vmatprep.subr.bf16.mxu0 0
        %911 = vmatpush1.bf16.msra.mxu0 0
        %912 = vmatprep.subr.bf16.mxu0 0
        %913 = vmatpush1.bf16.msra.mxu0 0
        %914 = vmatprep.subr.bf16.mxu0 0
        %915 = vmatpush1.bf16.msra.mxu0 0
        %916 = vmatprep.subr.bf16.mxu0 0
        %917 = vmatpush1.bf16.msra.mxu0 0
        %918 = vmatprep.subr.bf16.mxu0 0
        %919 = vmatpush1.bf16.msra.mxu0 0
        %920 = vmatprep.subr.bf16.mxu0 0
        %921 = vmatpush1.bf16.msra.mxu0 %v904
        %922 = vmatprep.subr.bf16.mxu0 0
        %923 = vmatpush2.bf16.msra.mxu0 0
        %924 = vmatprep.subr.bf16.mxu0 0
        %925 = vmatpush2.bf16.msra.mxu0 0
        %926 = vmatprep.subr.bf16.mxu0 0
        %927 = vmatpush2.bf16.msra.mxu0 0
        %928 = vmatprep.subr.bf16.mxu0 0
        %929 = vmatpush2.bf16.msra.mxu0 0
        %930 = vmatprep.subr.bf16.mxu0 0
        %931 = vmatpush2.bf16.msra.mxu0 0
        %932 = vmatprep.subr.bf16.mxu0 0
        %933 = vmatpush2.bf16.msra.mxu0 0
        %934 = vmatprep.subr.bf16.mxu0 0
        %935 = vmatpush2.bf16.msra.mxu0 0
        %936 = vmatprep.subr.bf16.mxu0 0
        %937 = vmatpush2.bf16.msra.mxu0 0
        %938 = vmatprep.mubr.bf16.mxu0 0
        %939 = vmatmul.mubr.bf16.gmra.mxu0 %v901
        %v940 = vpop.f32.mrf.mxu0
        %v941 = vadd.f32 0.0, %v940
        %v942 = vpop.f32.mrf.mxu0
        %v943 = vpop.f32.mrf.mxu0
        %v944 = vpop.f32.mrf.mxu0
        %945 = vdwg.mxu0
        %947 = vrot.lane.b32.xlu0 %v941, 16
        %v948 = vpop.permute.xlu0 %947
        %vm950 = vcmask 195712
        %951 = vst.msk [vmem:[#allocation3] sm:$0xff] %vm950, %v948
        %v952 = vld [vmem:[%s545] sm:$0xf]
        %v953 = vld [vmem:[#allocation2] sm:$0xf]
        %s954 = sld [smem:[#allocation10 + $0x3]]
        %v955 = vstv %s954
        %v956 = vmul.f32 %v955, %v525
        %s957 = sld [smem:[#allocation11 + $0x3]]
        %v958 = vstv %s957
        %v959 = vmul.f32 %v958, %v534
        %v960 = vadd.f32 %v956, %v959
        %s961 = sld [smem:[#allocation13 + $0x3]]
        %v962 = vstv %s961
        %v963 = vmul.f32 %v962, %v540
        %v964 = vadd.f32 %v960, %v963
        %v966 = vunpack.c.l.b16 %v952
        %v967 = vpack.c.b16 %v966, %v966
        %968 = vrot.lane.b32.xlu0 %v967, 104
        %v969 = vpop.permute.xlu0 %968
        %v971 = vunpack.c.l.b16 %v953
        %v972 = vpack.c.b16 %v971, %v971
        %973 = vrot.lane.b32.xlu0 %v972, 72
        %v974 = vpop.permute.xlu0 %973
        %v976 = vsel %vm564, %v969, 0
        %v979 = vsel %vm564, %v974, 0
        %981 = vmatprep.subr.bf16.mxu0 0
        %982 = vmatpush1.bf16.xpose.msra.mxu0 0
        %983 = vmatprep.subr.bf16.mxu0 0
        %984 = vmatpush1.bf16.xpose.msra.mxu0 0
        %985 = vmatprep.subr.bf16.mxu0 0
        %986 = vmatpush1.bf16.xpose.msra.mxu0 0
        %987 = vmatprep.subr.bf16.mxu0 0
        %988 = vmatpush1.bf16.xpose.msra.mxu0 0
        %989 = vmatprep.subr.bf16.mxu0 0
        %990 = vmatpush1.bf16.xpose.msra.mxu0 0
        %991 = vmatprep.subr.bf16.mxu0 0
        %992 = vmatpush1.bf16.xpose.msra.mxu0 0
        %993 = vmatprep.subr.bf16.mxu0 0
        %994 = vmatpush1.bf16.xpose.msra.mxu0 0
        %995 = vmatprep.subr.bf16.mxu0 0
        %996 = vmatpush1.bf16.xpose.msra.mxu0 %v979
        %997 = vmatprep.subr.bf16.mxu0 0
        %998 = vmatpush2.bf16.xpose.msra.mxu0 0
        %999 = vmatprep.subr.bf16.mxu0 0
        %1000 = vmatpush2.bf16.xpose.msra.mxu0 0
        %1001 = vmatprep.subr.bf16.mxu0 0
        %1002 = vmatpush2.bf16.xpose.msra.mxu0 0
        %1003 = vmatprep.subr.bf16.mxu0 0
        %1004 = vmatpush2.bf16.xpose.msra.mxu0 0
        %1005 = vmatprep.subr.bf16.mxu0 0
        %1006 = vmatpush2.bf16.xpose.msra.mxu0 0
        %1007 = vmatprep.subr.bf16.mxu0 0
        %1008 = vmatpush2.bf16.xpose.msra.mxu0 0
        %1009 = vmatprep.subr.bf16.mxu0 0
        %1010 = vmatpush2.bf16.xpose.msra.mxu0 0
        %1011 = vmatprep.subr.bf16.mxu0 0
        %1012 = vmatpush2.bf16.xpose.msra.mxu0 0
        %1013 = vmatprep.mubr.bf16.mxu0 0
        %1014 = vmatmul.mubr.bf16.gmra.mxu0 %v976
        %v1015 = vpop.f32.mrf.mxu0
        %v1016 = vadd.f32 %v964, %v1015
        %v1017 = vpop.f32.mrf.mxu0
        %v1018 = vpop.f32.mrf.mxu0
        %v1019 = vpop.f32.mrf.mxu0
        %1020 = vdwg.mxu0
        %v1021 = vadd.f32 %v1016, %v615
        %v1022 = vsel %vm564, %v1021, -inf
        %1023 = vmax.xlane.f32.xlu0 %v1022
        %v1024 = vpop.xlane.xlu0 %1023
        %v1025 = vsub.f32 %v1021, %v1024
        %v1026 = vmul.f32 %v1025, 1.442695
        %v1027 = vpow.pop %v1026
        %v1028 = vsel %vm564, %v1027, 0.0
        %1029 = vadd.xlane.f32.xlu0 %v1028
        %v1030 = vpop.xlane.xlu0 %1029
        %v1031 = vrcp.pop %v1030
        %v1032 = vmul.f32 %v1027, %v1031
        %v1033 = vpack.c.bf16 %v1032, %v1032
        %1034 = vrot.lane.b32.xlu0 %v972, 40
        %v1035 = vpop.permute.xlu0 %1034
        %v1037 = vsel %vm564, %v1033, 0
        %v1040 = vsel %vm635, %v1035, 0
        %1042 = vmatprep.subr.bf16.mxu0 0
        %1043 = vmatpush1.bf16.msra.mxu0 0
        %1044 = vmatprep.subr.bf16.mxu0 0
        %1045 = vmatpush1.bf16.msra.mxu0 0
        %1046 = vmatprep.subr.bf16.mxu0 0
        %1047 = vmatpush1.bf16.msra.mxu0 0
        %1048 = vmatprep.subr.bf16.mxu0 0
        %1049 = vmatpush1.bf16.msra.mxu0 0
        %1050 = vmatprep.subr.bf16.mxu0 0
        %1051 = vmatpush1.bf16.msra.mxu0 0
        %1052 = vmatprep.subr.bf16.mxu0 0
        %1053 = vmatpush1.bf16.msra.mxu0 0
        %1054 = vmatprep.subr.bf16.mxu0 0
        %1055 = vmatpush1.bf16.msra.mxu0 0
        %1056 = vmatprep.subr.bf16.mxu0 0
        %1057 = vmatpush1.bf16.msra.mxu0 %v1040
        %1058 = vmatprep.subr.bf16.mxu0 0
        %1059 = vmatpush2.bf16.msra.mxu0 0
        %1060 = vmatprep.subr.bf16.mxu0 0
        %1061 = vmatpush2.bf16.msra.mxu0 0
        %1062 = vmatprep.subr.bf16.mxu0 0
        %1063 = vmatpush2.bf16.msra.mxu0 0
        %1064 = vmatprep.subr.bf16.mxu0 0
        %1065 = vmatpush2.bf16.msra.mxu0 0
        %1066 = vmatprep.subr.bf16.mxu0 0
        %1067 = vmatpush2.bf16.msra.mxu0 0
        %1068 = vmatprep.subr.bf16.mxu0 0
        %1069 = vmatpush2.bf16.msra.mxu0 0
        %1070 = vmatprep.subr.bf16.mxu0 0
        %1071 = vmatpush2.bf16.msra.mxu0 0
        %1072 = vmatprep.subr.bf16.mxu0 0
        %1073 = vmatpush2.bf16.msra.mxu0 0
        %1074 = vmatprep.mubr.bf16.mxu0 0
        %1075 = vmatmul.mubr.bf16.gmra.mxu0 %v1037
        %v1076 = vpop.f32.mrf.mxu0
        %v1077 = vadd.f32 0.0, %v1076
        %v1078 = vpop.f32.mrf.mxu0
        %v1079 = vpop.f32.mrf.mxu0
        %v1080 = vpop.f32.mrf.mxu0
        %1081 = vdwg.mxu0
        %1083 = vrot.lane.b32.xlu0 %v1077, 24
        %v1084 = vpop.permute.xlu0 %1083
        %vm1086 = vcmask 261312
        %1087 = vst.msk [vmem:[#allocation3] sm:$0xff] %vm1086, %v1084
        %v1088 = vld [vmem:[#allocation3] sm:$0xff]
        %vm1089 = vcmask 261120
        %1090 = vst.msk [vmem:[%s420] sm:$0xff] %vm1089, %v1088
        %s1091 = sand.u32 %s235, 1
        %s1092 = scalar_lea.sflag [#allocation6], %s1091
        %s1093 = sand.u32 %s235, 1
        %s1094 = smul.addr %s1093, 8
        %s1095 = scalar_lea.vmem [#allocation14], %s1094
        // Predicated region
        $region77: #{tpu_custom_call.1} parent=51 // pred_check
          %p1096 = pneg %p245
        $region78: #{tpu_custom_call.1} parent=51 // pred_check_branch
          %1098 = sbr.rel (%p1096) target = $region80
        $region79: #{tpu_custom_call.1} parent=51 // pred_region
          %s1100 = ssub.s32 128, 128
          %1101 = vsyncadd %s1092, %s1100
          %s1102 = sadd.s32 %s33, %s32
          %s1103 = smul.addr %s1102, 128
          %s1104 = scalar_lea.hbm %s8, %s1103
          %s1106 = sshll.u32 %s1095, 4
          %s1107 = int_to_ptr.vmem [resolvable:$true] %s1106
          %1109 = dma.vmem_to_hbm [thread:$0]  %s1107, 128, %s1104, %s1092
        $region80: #{tpu_custom_call.1} parent=51 // pred_fallthru
          _
      $region52: #{tpu_custom_call.1} parent=5 // pred_fallthru
        _
      %p1110 = scmp.le.s32.totalorder 2, %s23
      // Predicated region
      $region81: #{tpu_custom_call.1} parent=5 // pred_check
        %p1111 = pneg %p1110
      $region82: #{tpu_custom_call.1} parent=5 // pred_check_branch
        %1113 = sbr.rel (%p1111) target = $region84
      $region83: #{tpu_custom_call.1} parent=5 // pred_region
        %s1114 = ssub.s32 %s23, 2
        // Predicated region
        $region85: #{tpu_custom_call.1} parent=83 // pred_check
          %p1115 = pneg %p251
        $region86: #{tpu_custom_call.1} parent=83 // pred_check_branch
          %1117 = sbr.rel (%p1115) target = $region88
        $region87: #{tpu_custom_call.1} parent=83 // pred_region
          %s1118 = sand.u32 %s236, 1
          %s1119 = scalar_lea.sflag [#allocation6], %s1118
          %s1120 = sand.u32 %s236, 1
          %s1121 = smul.addr %s1120, 8
          %s1122 = scalar_lea.vmem [#allocation14], %s1121
          %1123 = dma.done %s1119, 128
        $region88: #{tpu_custom_call.1} parent=83 // pred_fallthru
          _
      $region84: #{tpu_custom_call.1} parent=5 // pred_fallthru
        _
    $region6: #{tpu_custom_call.1} parent=1 // loop_footer
      %s27 = sadd.s32 1, %s23
    $region7: #{tpu_custom_call.1} parent=1 // loop_footer_branch
      %22 = sbr.rel target = $region3
    $region8: #{tpu_custom_call.1} parent=1 // loop_exit
      _
    %1124 = vsyncpa [#allocation5], 1
    %s1125 = scalar_lea.sflag [#allocation5], 1
    %1126 = vsyncpa %s1125, 1
    %1127 = vsyncpa [#allocation9], 1
    %1128 = vsyncpa [#allocation6], 1
    %s1129 = scalar_lea.sflag [#allocation6], 1
    %1130 = vsyncpa %s1129, 1
    %1131 = vsyncpa [#allocation7], 1
    %s1132 = scalar_lea.sflag [#allocation7], 1
    %1133 = vsyncpa %s1132, 1
    %1134 = vsyncpa [#allocation12], 1

</llo_original>
